<compile_context>
chip_gen: v5e
topology: v5e:2x2
jax: 0.10.0
libtpu: 0.0.40
codegen_flags: <defaults>
</compile_context>

<pallas_src>
import jax
import jax.numpy as jnp
from jax.experimental import pallas as pl
from jax.experimental.pallas import tpu as pltpu


LANE = 128  # TPU lane width; conv outputs are padded to a multiple of this.


def _round_up(x, m):
    return (x + m - 1) // m * m


def _row_chunk(h):
    for c in (8, 4, 2, 1):
        if h % c == 0:
            return c
    return 1


# ---------------------------------------------------------------------------
# Pallas kernel: fused [channel concat] + zero-pad(1) + 3x3 conv (im2col, one
# MXU matmul per row chunk) + folded BatchNorm + ReLU.
# ---------------------------------------------------------------------------
def _make_conv_kernel(H, W, tH, n_inputs):
    def kernel(*refs):
        x_refs = refs[:n_inputs]
        w_ref, scale_ref, bias_ref, o_ref = refs[n_inputs:]
        cout = o_ref.shape[-1]
        cin = sum(int(r.shape[-1]) for r in x_refs)

        # In-kernel zero padding (padding=1); the channel concat happens implicitly
        # via the im2col piece ordering below, so neither the padded nor the
        # concatenated tensor ever touches HBM.
        xps = [jnp.pad(r[0], ((1, 1), (1, 1), (0, 0))) for r in x_refs]

        w = w_ref[...]           # (9*cin, cout_block)   bf16
        scale = scale_ref[...]   # (1, cout_block)       f32 (folded BN scale)
        bias = bias_ref[...]     # (1, cout_block)       f32 (folded BN bias)

        # Row-chunked im2col: one K = 9*cin matmul per chunk of tH output rows.
        for r0 in range(0, H, tH):
            pieces = [
                xp[r0 + kh:r0 + kh + tH, kw:kw + W, :]
                for kh in range(3)
                for kw in range(3)
                for xp in xps
            ]
            patches = jnp.concatenate(pieces, axis=-1).reshape(tH * W, 9 * cin)
            acc = jnp.dot(patches, w, preferred_element_type=jnp.float32)
            y = jnp.maximum(acc * scale + bias, 0.0)
            o_ref[0, r0:r0 + tH, :, :] = y.reshape(tH, W, cout).astype(o_ref.dtype)

    return kernel


def conv3x3_bn_relu(xs, w_hwio, bn_scale, bn_bias, *, cout_pad,
                    compute_dtype=jnp.bfloat16, cout_block=LANE):
    """Fused conv3x3 (padding=1, no bias) + BN(scale,bias) + ReLU.

    xs:      list of NHWC tensors whose channels are logically concatenated (in order).
    w_hwio:  (3, 3, sum(Cin_i), Cout).
    Returns (N, H, W, cout_pad) in compute_dtype; channels >= Cout are zero.
    """
    N, H, W = xs[0].shape[:3]
    cins = [int(x.shape[-1]) for x in xs]
    cin = sum(cins)
    cout = w_hwio.shape[-1]
    assert w_hwio.shape[:3] == (3, 3, cin)
    assert cout_pad % cout_block == 0

    # Pack weights so (kh, kw, ci) becomes one K = 9*cin contraction; pad Cout to a
    # lane-dense multiple of 128.  Padded scale/bias are zero -> padded outputs are 0.
    w_packed = w_hwio.reshape(9 * cin, cout)
    w_packed = jnp.pad(w_packed, ((0, 0), (0, cout_pad - cout))).astype(compute_dtype)
    scale2d = jnp.pad(bn_scale.astype(jnp.float32), (0, cout_pad - cout)).reshape(1, cout_pad)
    bias2d = jnp.pad(bn_bias.astype(jnp.float32), (0, cout_pad - cout)).reshape(1, cout_pad)

    xs = [x.astype(compute_dtype) for x in xs]
    tH = _row_chunk(H)
    n_cout = cout_pad // cout_block

    in_specs = [
        pl.BlockSpec((1, H, W, c), lambda n, j: (n, 0, 0, 0)) for c in cins
    ] + [
        pl.BlockSpec((9 * cin, cout_block), lambda n, j: (0, j)),
        pl.BlockSpec((1, cout_block), lambda n, j: (0, j)),
        pl.BlockSpec((1, cout_block), lambda n, j: (0, j)),
    ]
    out_spec = pl.BlockSpec((1, H, W, cout_block), lambda n, j: (n, 0, 0, j))

    return pl.pallas_call(
        _make_conv_kernel(H, W, tH, len(xs)),
        out_shape=jax.ShapeDtypeStruct((N, H, W, cout_pad), compute_dtype),
        grid_spec=pltpu.PrefetchScalarGridSpec(
            num_scalar_prefetch=0,
            grid=(N, n_cout),
            in_specs=in_specs,
            out_specs=out_spec,
        ),
        compiler_params=pltpu.CompilerParams(
            dimension_semantics=("parallel", "parallel"),
            vmem_limit_bytes=48 * 1024 * 1024,  # stays under v7x's 64 MiB physical VMEM
        ),
    )(*xs, w_packed, scale2d, bias2d)


# ---------------------------------------------------------------------------
# Bilinear upsample, align_corners=True, as interpolation matrices (plain-JAX glue;
# it is a fixed tiny linear map, negligible next to the convs).
# ---------------------------------------------------------------------------
def _interp_matrix(out_size, in_size):
    if in_size == 1:
        return jnp.ones((out_size, 1), dtype=jnp.float32)
    denom = max(out_size - 1, 1)
    pos = jnp.arange(out_size, dtype=jnp.float32) * (in_size - 1) / denom
    i0 = jnp.clip(jnp.floor(pos).astype(jnp.int32), 0, in_size - 1)
    i1 = jnp.clip(i0 + 1, 0, in_size - 1)
    frac = pos - i0.astype(jnp.float32)
    m = jnp.zeros((out_size, in_size), dtype=jnp.float32)
    m = m.at[jnp.arange(out_size), i0].add(1.0 - frac)
    m = m.at[jnp.arange(out_size), i1].add(frac)
    return m


def bilinear_upsample_nhwc(x, scale_factor=2):
    N, H, W, C = x.shape
    xf = x.astype(jnp.float32)
    Uh = _interp_matrix(H * scale_factor, H)
    Uw = _interp_matrix(W * scale_factor, W)
    y = jnp.einsum("ah,nhwc->nawc", Uh, xf)
    y = jnp.einsum("bw,nawc->nabc", Uw, y)
    return y


# ---------------------------------------------------------------------------
# Up module wrapper
# ---------------------------------------------------------------------------
def fold_bn(gamma, beta, running_mean, running_var, eps=1e-5):
    scale = gamma / jnp.sqrt(running_var + eps)
    bias = beta - running_mean * scale
    return scale, bias


def up_forward(x1_nchw, x2_nchw, params, scale_factor=2, compute_dtype=jnp.bfloat16):
    # NCHW -> NHWC for the kernels.
    x1 = jnp.transpose(x1_nchw, (0, 2, 3, 1))
    x2 = jnp.transpose(x2_nchw, (0, 2, 3, 1))
    x1 = bilinear_upsample_nhwc(x1, scale_factor)  # f32 interpolation

    s1, b1 = fold_bn(params["bn1_gamma"], params["bn1_beta"],
                     params["bn1_mean"], params["bn1_var"])
    s2, b2 = fold_bn(params["bn2_gamma"], params["bn2_beta"],
                     params["bn2_mean"], params["bn2_var"])

    cout = params["w1"].shape[-1]
    cout_pad = _round_up(cout, LANE)

    # conv1: torch.cat([x2, x1], dim=1) fused into the kernel (x2 channels first).
    y = conv3x3_bn_relu([x2, x1], params["w1"], s1, b1,
                        cout_pad=cout_pad, compute_dtype=compute_dtype)

    # conv2 consumes the channel-padded intermediate; pad its Cin with zero weights.
    w2 = params["w2"]
    w2p = jnp.pad(w2, ((0, 0), (0, 0), (0, cout_pad - w2.shape[2]), (0, 0)))
    y = conv3x3_bn_relu([y], w2p, s2, b2,
                        cout_pad=cout_pad, compute_dtype=compute_dtype)

    # Strip channel padding, restore dtype and NCHW convention.
    y = y[..., :cout].astype(x1_nchw.dtype)
    return jnp.transpose(y, (0, 3, 1, 2))


def init_params(key, in_channels, out_channels):
    k1, k2, k3, k4 = jax.random.split(key, 4)
    # Conv weights stored HWIO (3, 3, Cin, Cout); PyTorch layout is OIHW.
    w1 = 0.1 * jax.random.normal(k1, (3, 3, in_channels, out_channels), jnp.float32)
    w2 = 0.1 * jax.random.normal(k2, (3, 3, out_channels, out_channels), jnp.float32)
    # BatchNorm in eval mode: deterministic gamma/beta + default running stats.
    # TODO(synk): training-mode BatchNorm (batch statistics) not implemented.
    return {
        "w1": w1,
        "w2": w2,
        "bn1_gamma": 1.0 + 0.05 * jax.random.normal(k3, (out_channels,), jnp.float32),
        "bn1_beta": 0.01 * jnp.arange(out_channels, dtype=jnp.float32),
        "bn1_mean": jnp.zeros((out_channels,), jnp.float32),
        "bn1_var": jnp.ones((out_channels,), jnp.float32),
        "bn2_gamma": 1.0 + 0.05 * jax.random.normal(k4, (out_channels,), jnp.float32),
        "bn2_beta": -0.01 * jnp.arange(out_channels, dtype=jnp.float32),
        "bn2_mean": jnp.zeros((out_channels,), jnp.float32),
        "bn2_var": jnp.ones((out_channels,), jnp.float32),
    }


if __name__ == "__main__":
    key = jax.random.PRNGKey(0)
    kx1, kx2, kp = jax.random.split(key, 3)

    N, C1, C2 = 2, 4, 4
    H1, W1 = 8, 8          # low-res feature map (to be upsampled x2)
    H2, W2 = 16, 16        # high-res skip feature map
    in_channels = C1 + C2  # channels after concat
    out_channels = 8

    x1 = jax.random.normal(kx1, (N, C1, H1, W1), jnp.float32)   # NCHW, like PyTorch
    x2 = jax.random.normal(kx2, (N, C2, H2, W2), jnp.float32)   # NCHW, like PyTorch

    params = init_params(kp, in_channels, out_channels)

    out = up_forward(x1, x2, params, scale_factor=2)
    out = jax.block_until_ready(out)
    assert out.shape == (N, out_channels, H2, W2)
    assert bool(jnp.all(jnp.isfinite(out)))
    print("KERNEL_OK")
</pallas_src>

<mosaic_0001>
module attributes {stable_mosaic.version = 11 : i64} {
  func.func @kernel(%arg0: i32, %arg1: i32, %arg2: memref<1x16x16x4xbf16, #tpu.memory_space<vmem>>, %arg3: memref<1x16x16x4xbf16, #tpu.memory_space<vmem>>, %arg4: memref<72x128xbf16, #tpu.memory_space<vmem>>, %arg5: memref<1x128xf32, #tpu.memory_space<vmem>>, %arg6: memref<1x128xf32, #tpu.memory_space<vmem>>, %arg7: memref<1x16x16x128xbf16, #tpu.memory_space<vmem>>) attributes {dimension_semantics = [#tpu.dimension_semantics<parallel>, #tpu.dimension_semantics<parallel>], iteration_bounds = array<i64: 2, 1>, scalar_prefetch = 0 : i64, scratch_operands = 0 : i64, tpu.core_type = #tpu.core_type<tc>, window_params = [{transform_indices = @transform_0, window_bounds = array<i64: 1, 16, 16, 4>}, {transform_indices = @transform_1, window_bounds = array<i64: 1, 16, 16, 4>}, {transform_indices = @transform_2, window_bounds = array<i64: 72, 128>}, {transform_indices = @transform_3, window_bounds = array<i64: 1, 128>}, {transform_indices = @transform_4, window_bounds = array<i64: 1, 128>}, {transform_indices = @transform_5, window_bounds = array<i64: 1, 16, 16, 128>}]} {
    %c0 = arith.constant 0 : index
    %c0_0 = arith.constant 0 : index
    %c0_1 = arith.constant 0 : index
    %c0_2 = arith.constant 0 : index
    %0 = vector.load %arg2[%c0, %c0_0, %c0_1, %c0_2] : memref<1x16x16x4xbf16, #tpu.memory_space<vmem>>, vector<1x16x16x4xbf16>
    %1 = vector.shape_cast %0 : vector<1x16x16x4xbf16> to vector<16x16x4xbf16>
    %c0_i32 = arith.constant 0 : i32
    %2 = arith.sitofp %c0_i32 : i32 to bf16
    %3 = vector.broadcast %2 : bf16 to vector<1x16x4xbf16>
    %4 = tpu.concatenate %3, %1 in 0 : vector<1x16x4xbf16>, vector<16x16x4xbf16> -> vector<17x16x4xbf16>
    %5 = vector.broadcast %2 : bf16 to vector<1x16x4xbf16>
    %6 = tpu.concatenate %4, %5 in 0 : vector<17x16x4xbf16>, vector<1x16x4xbf16> -> vector<18x16x4xbf16>
    %7 = vector.broadcast %2 : bf16 to vector<18x1x4xbf16>
    %8 = tpu.concatenate %7, %6 in 1 : vector<18x1x4xbf16>, vector<18x16x4xbf16> -> vector<18x17x4xbf16>
    %9 = vector.broadcast %2 : bf16 to vector<18x1x4xbf16>
    %10 = tpu.concatenate %8, %9 in 1 : vector<18x17x4xbf16>, vector<18x1x4xbf16> -> vector<18x18x4xbf16>
    %c0_3 = arith.constant 0 : index
    %c0_4 = arith.constant 0 : index
    %c0_5 = arith.constant 0 : index
    %c0_6 = arith.constant 0 : index
    %11 = vector.load %arg3[%c0_3, %c0_4, %c0_5, %c0_6] : memref<1x16x16x4xbf16, #tpu.memory_space<vmem>>, vector<1x16x16x4xbf16>
    %12 = vector.shape_cast %11 : vector<1x16x16x4xbf16> to vector<16x16x4xbf16>
    %c0_i32_7 = arith.constant 0 : i32
    %13 = arith.sitofp %c0_i32_7 : i32 to bf16
    %14 = vector.broadcast %13 : bf16 to vector<1x16x4xbf16>
    %15 = tpu.concatenate %14, %12 in 0 : vector<1x16x4xbf16>, vector<16x16x4xbf16> -> vector<17x16x4xbf16>
    %16 = vector.broadcast %13 : bf16 to vector<1x16x4xbf16>
    %17 = tpu.concatenate %15, %16 in 0 : vector<17x16x4xbf16>, vector<1x16x4xbf16> -> vector<18x16x4xbf16>
    %18 = vector.broadcast %13 : bf16 to vector<18x1x4xbf16>
    %19 = tpu.concatenate %18, %17 in 1 : vector<18x1x4xbf16>, vector<18x16x4xbf16> -> vector<18x17x4xbf16>
    %20 = vector.broadcast %13 : bf16 to vector<18x1x4xbf16>
    %21 = tpu.concatenate %19, %20 in 1 : vector<18x17x4xbf16>, vector<18x1x4xbf16> -> vector<18x18x4xbf16>
    %c0_8 = arith.constant 0 : index
    %c0_9 = arith.constant 0 : index
    %22 = vector.load %arg4[%c0_8, %c0_9] : memref<72x128xbf16, #tpu.memory_space<vmem>>, vector<72x128xbf16>
    %c0_10 = arith.constant 0 : index
    %c0_11 = arith.constant 0 : index
    %23 = vector.load %arg5[%c0_10, %c0_11] : memref<1x128xf32, #tpu.memory_space<vmem>>, vector<1x128xf32>
    %c0_12 = arith.constant 0 : index
    %c0_13 = arith.constant 0 : index
    %24 = vector.load %arg6[%c0_12, %c0_13] : memref<1x128xf32, #tpu.memory_space<vmem>>, vector<1x128xf32>
    %25 = vector.extract_strided_slice %10 {offsets = [0, 0, 0], sizes = [8, 16, 4], strides = [1, 1, 1]} : vector<18x18x4xbf16> to vector<8x16x4xbf16>
    %26 = vector.extract_strided_slice %21 {offsets = [0, 0, 0], sizes = [8, 16, 4], strides = [1, 1, 1]} : vector<18x18x4xbf16> to vector<8x16x4xbf16>
    %27 = vector.extract_strided_slice %10 {offsets = [0, 1, 0], sizes = [8, 16, 4], strides = [1, 1, 1]} : vector<18x18x4xbf16> to vector<8x16x4xbf16>
    %28 = vector.extract_strided_slice %21 {offsets = [0, 1, 0], sizes = [8, 16, 4], strides = [1, 1, 1]} : vector<18x18x4xbf16> to vector<8x16x4xbf16>
    %29 = vector.extract_strided_slice %10 {offsets = [0, 2, 0], sizes = [8, 16, 4], strides = [1, 1, 1]} : vector<18x18x4xbf16> to vector<8x16x4xbf16>
    %30 = vector.extract_strided_slice %21 {offsets = [0, 2, 0], sizes = [8, 16, 4], strides = [1, 1, 1]} : vector<18x18x4xbf16> to vector<8x16x4xbf16>
    %31 = vector.extract_strided_slice %10 {offsets = [1, 0, 0], sizes = [8, 16, 4], strides = [1, 1, 1]} : vector<18x18x4xbf16> to vector<8x16x4xbf16>
    %32 = vector.extract_strided_slice %21 {offsets = [1, 0, 0], sizes = [8, 16, 4], strides = [1, 1, 1]} : vector<18x18x4xbf16> to vector<8x16x4xbf16>
    %33 = vector.extract_strided_slice %10 {offsets = [1, 1, 0], sizes = [8, 16, 4], strides = [1, 1, 1]} : vector<18x18x4xbf16> to vector<8x16x4xbf16>
    %34 = vector.extract_strided_slice %21 {offsets = [1, 1, 0], sizes = [8, 16, 4], strides = [1, 1, 1]} : vector<18x18x4xbf16> to vector<8x16x4xbf16>
    %35 = vector.extract_strided_slice %10 {offsets = [1, 2, 0], sizes = [8, 16, 4], strides = [1, 1, 1]} : vector<18x18x4xbf16> to vector<8x16x4xbf16>
    %36 = vector.extract_strided_slice %21 {offsets = [1, 2, 0], sizes = [8, 16, 4], strides = [1, 1, 1]} : vector<18x18x4xbf16> to vector<8x16x4xbf16>
    %37 = vector.extract_strided_slice %10 {offsets = [2, 0, 0], sizes = [8, 16, 4], strides = [1, 1, 1]} : vector<18x18x4xbf16> to vector<8x16x4xbf16>
    %38 = vector.extract_strided_slice %21 {offsets = [2, 0, 0], sizes = [8, 16, 4], strides = [1, 1, 1]} : vector<18x18x4xbf16> to vector<8x16x4xbf16>
    %39 = vector.extract_strided_slice %10 {offsets = [2, 1, 0], sizes = [8, 16, 4], strides = [1, 1, 1]} : vector<18x18x4xbf16> to vector<8x16x4xbf16>
    %40 = vector.extract_strided_slice %21 {offsets = [2, 1, 0], sizes = [8, 16, 4], strides = [1, 1, 1]} : vector<18x18x4xbf16> to vector<8x16x4xbf16>
    %41 = vector.extract_strided_slice %10 {offsets = [2, 2, 0], sizes = [8, 16, 4], strides = [1, 1, 1]} : vector<18x18x4xbf16> to vector<8x16x4xbf16>
    %42 = vector.extract_strided_slice %21 {offsets = [2, 2, 0], sizes = [8, 16, 4], strides = [1, 1, 1]} : vector<18x18x4xbf16> to vector<8x16x4xbf16>
    %43 = tpu.concatenate %25, %26, %27, %28, %29, %30, %31, %32, %33, %34, %35, %36, %37, %38, %39, %40 in 2 : vector<8x16x4xbf16>, vector<8x16x4xbf16>, vector<8x16x4xbf16>, vector<8x16x4xbf16>, vector<8x16x4xbf16>, vector<8x16x4xbf16>, vector<8x16x4xbf16>, vector<8x16x4xbf16>, vector<8x16x4xbf16>, vector<8x16x4xbf16>, vector<8x16x4xbf16>, vector<8x16x4xbf16>, vector<8x16x4xbf16>, vector<8x16x4xbf16>, vector<8x16x4xbf16>, vector<8x16x4xbf16> -> vector<8x16x64xbf16>
    %44 = tpu.concatenate %41, %42 in 2 : vector<8x16x4xbf16>, vector<8x16x4xbf16> -> vector<8x16x8xbf16>
    %45 = tpu.concatenate %43, %44 in 2 : vector<8x16x64xbf16>, vector<8x16x8xbf16> -> vector<8x16x72xbf16>
    %46 = vector.shape_cast %45 : vector<8x16x72xbf16> to vector<128x72xbf16>
    %cst = arith.constant dense<0.000000e+00> : vector<128x128xf32>
    %47 = tpu.matmul %46, %22, %cst {dimension_numbers = #tpu.dot_dimension_numbers<[1], [0], [0], [1], [0, 0, 1, 1], [], []>} : vector<128x72xbf16>, vector<72x128xbf16>, vector<128x128xf32> -> vector<128x128xf32>
    %48 = vector.broadcast %23 : vector<1x128xf32> to vector<128x128xf32>
    %49 = arith.mulf %47, %48 : vector<128x128xf32>
    %50 = vector.broadcast %24 : vector<1x128xf32> to vector<128x128xf32>
    %51 = arith.addf %49, %50 : vector<128x128xf32>
    %cst_14 = arith.constant 0.000000e+00 : f32
    %52 = vector.broadcast %cst_14 : f32 to vector<128x128xf32>
    %53 = arith.maximumf %51, %52 : vector<128x128xf32>
    %54 = vector.shape_cast %53 : vector<128x128xf32> to vector<8x16x128xf32>
    %55 = arith.truncf %54 : vector<8x16x128xf32> to vector<8x16x128xbf16>
    %c0_15 = arith.constant 0 : index
    %c0_16 = arith.constant 0 : index
    %c0_17 = arith.constant 0 : index
    %c0_18 = arith.constant 0 : index
    %56 = vector.load %arg7[%c0_15, %c0_16, %c0_17, %c0_18] : memref<1x16x16x128xbf16, #tpu.memory_space<vmem>>, vector<1x8x16x128xbf16>
    %57 = vector.shape_cast %56 : vector<1x8x16x128xbf16> to vector<8x16x128xbf16>
    %58 = vector.shape_cast %55 : vector<8x16x128xbf16> to vector<1x8x16x128xbf16>
    tpu.vector_store %arg7[%c0_15, %c0_16, %c0_17, %c0_18], %58 {strides = array<i32>} : memref<1x16x16x128xbf16, #tpu.memory_space<vmem>>, vector<1x8x16x128xbf16>,
    %59 = vector.extract_strided_slice %10 {offsets = [8, 0, 0], sizes = [8, 16, 4], strides = [1, 1, 1]} : vector<18x18x4xbf16> to vector<8x16x4xbf16>
    %60 = vector.extract_strided_slice %21 {offsets = [8, 0, 0], sizes = [8, 16, 4], strides = [1, 1, 1]} : vector<18x18x4xbf16> to vector<8x16x4xbf16>
    %61 = vector.extract_strided_slice %10 {offsets = [8, 1, 0], sizes = [8, 16, 4], strides = [1, 1, 1]} : vector<18x18x4xbf16> to vector<8x16x4xbf16>
    %62 = vector.extract_strided_slice %21 {offsets = [8, 1, 0], sizes = [8, 16, 4], strides = [1, 1, 1]} : vector<18x18x4xbf16> to vector<8x16x4xbf16>
    %63 = vector.extract_strided_slice %10 {offsets = [8, 2, 0], sizes = [8, 16, 4], strides = [1, 1, 1]} : vector<18x18x4xbf16> to vector<8x16x4xbf16>
    %64 = vector.extract_strided_slice %21 {offsets = [8, 2, 0], sizes = [8, 16, 4], strides = [1, 1, 1]} : vector<18x18x4xbf16> to vector<8x16x4xbf16>
    %65 = vector.extract_strided_slice %10 {offsets = [9, 0, 0], sizes = [8, 16, 4], strides = [1, 1, 1]} : vector<18x18x4xbf16> to vector<8x16x4xbf16>
    %66 = vector.extract_strided_slice %21 {offsets = [9, 0, 0], sizes = [8, 16, 4], strides = [1, 1, 1]} : vector<18x18x4xbf16> to vector<8x16x4xbf16>
    %67 = vector.extract_strided_slice %10 {offsets = [9, 1, 0], sizes = [8, 16, 4], strides = [1, 1, 1]} : vector<18x18x4xbf16> to vector<8x16x4xbf16>
    %68 = vector.extract_strided_slice %21 {offsets = [9, 1, 0], sizes = [8, 16, 4], strides = [1, 1, 1]} : vector<18x18x4xbf16> to vector<8x16x4xbf16>
    %69 = vector.extract_strided_slice %10 {offsets = [9, 2, 0], sizes = [8, 16, 4], strides = [1, 1, 1]} : vector<18x18x4xbf16> to vector<8x16x4xbf16>
    %70 = vector.extract_strided_slice %21 {offsets = [9, 2, 0], sizes = [8, 16, 4], strides = [1, 1, 1]} : vector<18x18x4xbf16> to vector<8x16x4xbf16>
    %71 = vector.extract_strided_slice %10 {offsets = [10, 0, 0], sizes = [8, 16, 4], strides = [1, 1, 1]} : vector<18x18x4xbf16> to vector<8x16x4xbf16>
    %72 = vector.extract_strided_slice %21 {offsets = [10, 0, 0], sizes = [8, 16, 4], strides = [1, 1, 1]} : vector<18x18x4xbf16> to vector<8x16x4xbf16>
    %73 = vector.extract_strided_slice %10 {offsets = [10, 1, 0], sizes = [8, 16, 4], strides = [1, 1, 1]} : vector<18x18x4xbf16> to vector<8x16x4xbf16>
    %74 = vector.extract_strided_slice %21 {offsets = [10, 1, 0], sizes = [8, 16, 4], strides = [1, 1, 1]} : vector<18x18x4xbf16> to vector<8x16x4xbf16>
    %75 = vector.extract_strided_slice %10 {offsets = [10, 2, 0], sizes = [8, 16, 4], strides = [1, 1, 1]} : vector<18x18x4xbf16> to vector<8x16x4xbf16>
    %76 = vector.extract_strided_slice %21 {offsets = [10, 2, 0], sizes = [8, 16, 4], strides = [1, 1, 1]} : vector<18x18x4xbf16> to vector<8x16x4xbf16>
    %77 = tpu.concatenate %59, %60, %61, %62, %63, %64, %65, %66, %67, %68, %69, %70, %71, %72, %73, %74 in 2 : vector<8x16x4xbf16>, vector<8x16x4xbf16>, vector<8x16x4xbf16>, vector<8x16x4xbf16>, vector<8x16x4xbf16>, vector<8x16x4xbf16>, vector<8x16x4xbf16>, vector<8x16x4xbf16>, vector<8x16x4xbf16>, vector<8x16x4xbf16>, vector<8x16x4xbf16>, vector<8x16x4xbf16>, vector<8x16x4xbf16>, vector<8x16x4xbf16>, vector<8x16x4xbf16>, vector<8x16x4xbf16> -> vector<8x16x64xbf16>
    %78 = tpu.concatenate %75, %76 in 2 : vector<8x16x4xbf16>, vector<8x16x4xbf16> -> vector<8x16x8xbf16>
    %79 = tpu.concatenate %77, %78 in 2 : vector<8x16x64xbf16>, vector<8x16x8xbf16> -> vector<8x16x72xbf16>
    %80 = vector.shape_cast %79 : vector<8x16x72xbf16> to vector<128x72xbf16>
    %cst_19 = arith.constant dense<0.000000e+00> : vector<128x128xf32>
    %81 = tpu.matmul %80, %22, %cst_19 {dimension_numbers = #tpu.dot_dimension_numbers<[1], [0], [0], [1], [0, 0, 1, 1], [], []>} : vector<128x72xbf16>, vector<72x128xbf16>, vector<128x128xf32> -> vector<128x128xf32>
    %82 = vector.broadcast %23 : vector<1x128xf32> to vector<128x128xf32>
    %83 = arith.mulf %81, %82 : vector<128x128xf32>
    %84 = vector.broadcast %24 : vector<1x128xf32> to vector<128x128xf32>
    %85 = arith.addf %83, %84 : vector<128x128xf32>
    %cst_20 = arith.constant 0.000000e+00 : f32
    %86 = vector.broadcast %cst_20 : f32 to vector<128x128xf32>
    %87 = arith.maximumf %85, %86 : vector<128x128xf32>
    %88 = vector.shape_cast %87 : vector<128x128xf32> to vector<8x16x128xf32>
    %89 = arith.truncf %88 : vector<8x16x128xf32> to vector<8x16x128xbf16>
    %c0_21 = arith.constant 0 : index
    %c8 = arith.constant 8 : index
    %c0_22 = arith.constant 0 : index
    %c0_23 = arith.constant 0 : index
    %90 = vector.load %arg7[%c0_21, %c8, %c0_22, %c0_23] : memref<1x16x16x128xbf16, #tpu.memory_space<vmem>>, vector<1x8x16x128xbf16>
    %91 = vector.shape_cast %90 : vector<1x8x16x128xbf16> to vector<8x16x128xbf16>
    %92 = vector.shape_cast %89 : vector<8x16x128xbf16> to vector<1x8x16x128xbf16>
    tpu.vector_store %arg7[%c0_21, %c8, %c0_22, %c0_23], %92 {strides = array<i32>} : memref<1x16x16x128xbf16, #tpu.memory_space<vmem>>, vector<1x8x16x128xbf16>,
    return
  }
  func.func @transform_0(%arg0: i32, %arg1: i32) -> (i32, i32, i32, i32) {
    %c0_i32 = arith.constant 0 : i32
    %c0_i32_0 = arith.constant 0 : i32
    %c0_i32_1 = arith.constant 0 : i32
    %c0_i32_2 = arith.constant 0 : i32
    return %arg0, %c0_i32, %c0_i32_0, %c0_i32_1 : i32, i32, i32, i32
  }
  func.func @transform_1(%arg0: i32, %arg1: i32) -> (i32, i32, i32, i32) {
    %c0_i32 = arith.constant 0 : i32
    %c0_i32_0 = arith.constant 0 : i32
    %c0_i32_1 = arith.constant 0 : i32
    %c0_i32_2 = arith.constant 0 : i32
    return %arg0, %c0_i32, %c0_i32_0, %c0_i32_1 : i32, i32, i32, i32
  }
  func.func @transform_2(%arg0: i32, %arg1: i32) -> (i32, i32) {
    %c0_i32 = arith.constant 0 : i32
    %c0_i32_0 = arith.constant 0 : i32
    return %c0_i32, %arg1 : i32, i32
  }
  func.func @transform_3(%arg0: i32, %arg1: i32) -> (i32, i32) {
    %c0_i32 = arith.constant 0 : i32
    %c0_i32_0 = arith.constant 0 : i32
    return %c0_i32, %arg1 : i32, i32
  }
  func.func @transform_4(%arg0: i32, %arg1: i32) -> (i32, i32) {
    %c0_i32 = arith.constant 0 : i32
    %c0_i32_0 = arith.constant 0 : i32
    return %c0_i32, %arg1 : i32, i32
  }
  func.func @transform_5(%arg0: i32, %arg1: i32) -> (i32, i32, i32, i32) {
    %c0_i32 = arith.constant 0 : i32
    %c0_i32_0 = arith.constant 0 : i32
    %c0_i32_1 = arith.constant 0 : i32
    return %arg0, %c0_i32, %c0_i32_0, %arg1 : i32, i32, i32, i32
  }
}

</mosaic_0001>

<llo_original>
// kernel: tpu_custom_call.1
$region0: #{tpu_custom_call.1}
  #allocation0 [shape = 'u32[]', space=smem, size = 0x4, offset = 0x4, fixed_abs, tag = 'smem constant byte address 0x4 - core index']
  #allocation1 [shape = 'u32[72,128]{1,0:T(1,128)}', space=vmem, size = 0x9000, scoped, tag = 'internal scratch']
  %s0 = inlined_call_operand.vmem [shape: bf16[2,16,16,4], index: 0, kind: input, shape index: {}]
  %s1 = inlined_call_operand.vmem [shape: bf16[2,16,16,4], index: 1, kind: input, shape index: {}]
  %s2 = inlined_call_operand.vmem [shape: bf16[72,128], index: 2, kind: input, shape index: {}]
  %s3 = inlined_call_operand.vmem [shape: f32[1,128], index: 3, kind: input, shape index: {}]
  %s4 = inlined_call_operand.vmem [shape: f32[1,128], index: 4, kind: input, shape index: {}]
  %s5 = inlined_call_operand.hbm [shape: bf16[2,16,16,128], index: 5, kind: output, shape index: {}]
  %s6 = sld [smem:[#allocation0]]
  $region53: #{tpu_custom_call.1} parent=0
    _
  %s8 = ssub.s32 1, %s6
  %s9 = scalar_select 0, %s8, %s6
  $region1: #{tpu_custom_call.1} parent=0
    #allocation2 [shape = 'u8[131072]{0}', space=vmem, size = 0x20000, scoped, tag = 'output window, operand 0']
    #allocation3 [shape = 's32[2]{0}', space=sflag, size = 0x8, scoped, tag = 'scoped memory for tpu_custom_call.1']
    %10 = vsyncpa [#allocation3], 0
    %s11 = scalar_lea.sflag [#allocation3], 1
    %12 = vsyncpa %s11, 0
    loop: start=0, step=1, limit=4
    $region2: #{tpu_custom_call.1} parent=1 // loop_pre_header
      _
    $region3: #{tpu_custom_call.1} parent=1 // loop_header
      %s14 = sphi 0, %s18
      %p15 = scmp.ge.s32.totalorder %s14, 4
      %s21 = sphi 0, %s33
      %s22 = sphi 0, %s29
      %s23 = sphi 0, %s21
      %s24 = sphi 0, %s22
      %s25 = sphi 0, %s23
      %s26 = sphi 0, %s24
      %s36 = sphi 0, %s38
      %s39 = sphi 0, %s36
      %s40 = sphi 0, %s39
      %s56 = sphi 0, %s40
      %s62 = sphi 0, %s64
      %s65 = sphi 0, %s62
      %s66 = sphi 0, %s65
      %s82 = sphi 0, %s66
      %s88 = sphi 0, %s90
      %s91 = sphi 0, %s88
      %s92 = sphi 0, %s91
      %s108 = sphi 0, %s92
      %s114 = sphi 0, %s116
      %s117 = sphi 0, %s114
      %s118 = sphi 0, %s117
      %s134 = sphi 0, %s118
      %s140 = sphi 0, %s142
      %s143 = sphi 0, %s140
      %s144 = sphi 0, %s143
      %s160 = sphi 0, %s144
      %s168 = sphi 0, %s170
      %s171 = sphi 0, %s168
      %s172 = sphi 0, %s171
      %s188 = sphi 0, %s172
    $region4: #{tpu_custom_call.1} parent=1 // loop_header_branch
      %17 = sbr.rel (%p15) target = $region8
    $region5: #{tpu_custom_call.1} parent=1 // loop_body
      %s19 = ssub.s32 %s14, 1
      %s20 = ssub.s32 %s14, 2
      %s27 = sadd.s32 1, %s22
      %p28 = scmp.ge.s32.totalorder %s27, 1
      %s29 = scalar_select %p28, 0, %s27
      %s30 = sadd.s32 1, %s21
      %s31 = scalar_select %p28, %s30, %s21
      %p32 = scmp.ge.s32.totalorder %s31, 2
      %s33 = scalar_select %p32, 0, %s31
      %s34 = ssub.s32 %s21, %s33
      %p35 = scmp.eq.s32.totalorder %s34, 0
      %s37 = sadd.s32 %s36, 1
      %s38 = scalar_select %p35, %s36, %s37
      %p41 = pneg %p35
      %p42 = scmp.eq.s32.totalorder %s14, 1
      %p43 = por %p41, %p42
      %p44 = scmp.ne.s32.totalorder %s36, %s39
      %p45 = scmp.eq.s32.totalorder %s14, 0
      %p46 = por %p44, %p45
      %p47 = scmp.ne.s32.totalorder %s36, %s39
      %p48 = scmp.eq.s32.totalorder %s19, 1
      %p49 = por %p47, %p48
      %p50 = scmp.ne.s32.totalorder %s39, %s40
      %p51 = scmp.eq.s32.totalorder %s19, 0
      %p52 = por %p50, %p51
      %p53 = scmp.ne.s32.totalorder %s39, %s40
      %p54 = scmp.eq.s32.totalorder %s20, 1
      %p55 = por %p53, %p54
      %p57 = scmp.ne.s32.totalorder %s40, %s56
      %p58 = scmp.eq.s32.totalorder %s20, 0
      %p59 = por %p57, %p58
      %s60 = ssub.s32 %s21, %s33
      %p61 = scmp.eq.s32.totalorder %s60, 0
      %s63 = sadd.s32 %s62, 1
      %s64 = scalar_select %p61, %s62, %s63
      %p67 = pneg %p61
      %p68 = scmp.eq.s32.totalorder %s14, 1
      %p69 = por %p67, %p68
      %p70 = scmp.ne.s32.totalorder %s62, %s65
      %p71 = scmp.eq.s32.totalorder %s14, 0
      %p72 = por %p70, %p71
      %p73 = scmp.ne.s32.totalorder %s62, %s65
      %p74 = scmp.eq.s32.totalorder %s19, 1
      %p75 = por %p73, %p74
      %p76 = scmp.ne.s32.totalorder %s65, %s66
      %p77 = scmp.eq.s32.totalorder %s19, 0
      %p78 = por %p76, %p77
      %p79 = scmp.ne.s32.totalorder %s65, %s66
      %p80 = scmp.eq.s32.totalorder %s20, 1
      %p81 = por %p79, %p80
      %p83 = scmp.ne.s32.totalorder %s66, %s82
      %p84 = scmp.eq.s32.totalorder %s20, 0
      %p85 = por %p83, %p84
      %s86 = ssub.s32 %s22, %s29
      %p87 = scmp.eq.s32.totalorder %s86, 0
      %s89 = sadd.s32 %s88, 1
      %s90 = scalar_select %p87, %s88, %s89
      %p93 = pneg %p87
      %p94 = scmp.eq.s32.totalorder %s14, 1
      %p95 = por %p93, %p94
      %p96 = scmp.ne.s32.totalorder %s88, %s91
      %p97 = scmp.eq.s32.totalorder %s14, 0
      %p98 = por %p96, %p97
      %p99 = scmp.ne.s32.totalorder %s88, %s91
      %p100 = scmp.eq.s32.totalorder %s19, 1
      %p101 = por %p99, %p100
      %p102 = scmp.ne.s32.totalorder %s91, %s92
      %p103 = scmp.eq.s32.totalorder %s19, 0
      %p104 = por %p102, %p103
      %p105 = scmp.ne.s32.totalorder %s91, %s92
      %p106 = scmp.eq.s32.totalorder %s20, 1
      %p107 = por %p105, %p106
      %p109 = scmp.ne.s32.totalorder %s92, %s108
      %p110 = scmp.eq.s32.totalorder %s20, 0
      %p111 = por %p109, %p110
      %s112 = ssub.s32 %s22, %s29
      %p113 = scmp.eq.s32.totalorder %s112, 0
      %s115 = sadd.s32 %s114, 1
      %s116 = scalar_select %p113, %s114, %s115
      %p119 = pneg %p113
      %p120 = scmp.eq.s32.totalorder %s14, 1
      %p121 = por %p119, %p120
      %p122 = scmp.ne.s32.totalorder %s114, %s117
      %p123 = scmp.eq.s32.totalorder %s14, 0
      %p124 = por %p122, %p123
      %p125 = scmp.ne.s32.totalorder %s114, %s117
      %p126 = scmp.eq.s32.totalorder %s19, 1
      %p127 = por %p125, %p126
      %p128 = scmp.ne.s32.totalorder %s117, %s118
      %p129 = scmp.eq.s32.totalorder %s19, 0
      %p130 = por %p128, %p129
      %p131 = scmp.ne.s32.totalorder %s117, %s118
      %p132 = scmp.eq.s32.totalorder %s20, 1
      %p133 = por %p131, %p132
      %p135 = scmp.ne.s32.totalorder %s118, %s134
      %p136 = scmp.eq.s32.totalorder %s20, 0
      %p137 = por %p135, %p136
      %s138 = ssub.s32 %s22, %s29
      %p139 = scmp.eq.s32.totalorder %s138, 0
      %s141 = sadd.s32 %s140, 1
      %s142 = scalar_select %p139, %s140, %s141
      %p145 = pneg %p139
      %p146 = scmp.eq.s32.totalorder %s14, 1
      %p147 = por %p145, %p146
      %p148 = scmp.ne.s32.totalorder %s140, %s143
      %p149 = scmp.eq.s32.totalorder %s14, 0
      %p150 = por %p148, %p149
      %p151 = scmp.ne.s32.totalorder %s140, %s143
      %p152 = scmp.eq.s32.totalorder %s19, 1
      %p153 = por %p151, %p152
      %p154 = scmp.ne.s32.totalorder %s143, %s144
      %p155 = scmp.eq.s32.totalorder %s19, 0
      %p156 = por %p154, %p155
      %p157 = scmp.ne.s32.totalorder %s143, %s144
      %p158 = scmp.eq.s32.totalorder %s20, 1
      %p159 = por %p157, %p158
      %p161 = scmp.ne.s32.totalorder %s144, %s160
      %p162 = scmp.eq.s32.totalorder %s20, 0
      %p163 = por %p161, %p162
      %s164 = ssub.s32 %s21, %s33
      %s165 = ssub.s32 %s22, %s29
      %s166 = sor.u32 %s164, %s165
      %p167 = scmp.eq.s32.totalorder %s166, 0
      %s169 = sadd.s32 %s168, 1
      %s170 = scalar_select %p167, %s168, %s169
      %p173 = pneg %p167
      %p174 = scmp.eq.s32.totalorder %s14, 1
      %p175 = por %p173, %p174
      %p176 = scmp.ne.s32.totalorder %s168, %s171
      %p177 = scmp.eq.s32.totalorder %s14, 0
      %p178 = por %p176, %p177
      %p179 = scmp.ne.s32.totalorder %s168, %s171
      %p180 = scmp.eq.s32.totalorder %s19, 1
      %p181 = por %p179, %p180
      %p182 = scmp.ne.s32.totalorder %s171, %s172
      %p183 = scmp.eq.s32.totalorder %s19, 0
      %p184 = por %p182, %p183
      %p185 = scmp.ne.s32.totalorder %s171, %s172
      %p186 = scmp.eq.s32.totalorder %s20, 1
      %p187 = por %p185, %p186
      %p189 = scmp.ne.s32.totalorder %s172, %s188
      %p190 = scmp.eq.s32.totalorder %s20, 0
      %p191 = por %p189, %p190
      %p192 = scmp.le.s32.totalorder 1, %s14
      %p193 = scmp.lt.s32.totalorder %s14, 3
      %p194 = pnand %p192, %p193
      %p195 = pneg %p194
      // Predicated region
      $region9: #{tpu_custom_call.1} parent=5 // pred_check
        _
      $region10: #{tpu_custom_call.1} parent=5 // pred_check_branch
        %197 = sbr.rel (%p194) target = $region12
      $region11: #{tpu_custom_call.1} parent=5 // pred_region
        %s198 = ssub.s32 %s14, 1
        // Predicated region
        $region13: #{tpu_custom_call.1} parent=11 // pred_check
          %p199 = pneg %p104
        $region14: #{tpu_custom_call.1} parent=11 // pred_check_branch
          %201 = sbr.rel (%p199) target = $region16
        $region15: #{tpu_custom_call.1} parent=11 // pred_region
          %p202 = scmp.lt.s32.totalorder %s24, 0
          %s203 = scalar_select %p202, %s24, 0
          %s204 = smul.addr %s203, 4
          %s205 = scalar_lea.vmem %s2, %s204
        $region16: #{tpu_custom_call.1} parent=11 // pred_fallthru
          _
        // Predicated region
        $region17: #{tpu_custom_call.1} parent=11 // pred_check
          %p206 = pneg %p130
        $region18: #{tpu_custom_call.1} parent=11 // pred_check_branch
          %208 = sbr.rel (%p206) target = $region20
        $region19: #{tpu_custom_call.1} parent=11 // pred_region
          %p209 = scmp.lt.s32.totalorder %s24, 0
          %s210 = scalar_select %p209, %s24, 0
          %s211 = scalar_lea.vmem %s3, %s210
        $region20: #{tpu_custom_call.1} parent=11 // pred_fallthru
          _
        // Predicated region
        $region21: #{tpu_custom_call.1} parent=11 // pred_check
          %p212 = pneg %p156
        $region22: #{tpu_custom_call.1} parent=11 // pred_check_branch
          %214 = sbr.rel (%p212) target = $region24
        $region23: #{tpu_custom_call.1} parent=11 // pred_region
          %p215 = scmp.lt.s32.totalorder %s24, 0
          %s216 = scalar_select %p215, %s24, 0
          %s217 = scalar_lea.vmem %s4, %s216
        $region24: #{tpu_custom_call.1} parent=11 // pred_fallthru
          _
      $region12: #{tpu_custom_call.1} parent=5 // pred_fallthru
        _
      %p218 = scmp.lt.s32.totalorder %s14, 2
      // Predicated region
      $region25: #{tpu_custom_call.1} parent=5 // pred_check
        %p219 = pneg %p218
      $region26: #{tpu_custom_call.1} parent=5 // pred_check_branch
        %221 = sbr.rel (%p219) target = $region28
      $region27: #{tpu_custom_call.1} parent=5 // pred_region
        // Predicated region
        $region29: #{tpu_custom_call.1} parent=27 // pred_check
          %p222 = pneg %p46
        $region30: #{tpu_custom_call.1} parent=27 // pred_check_branch
          %224 = sbr.rel (%p222) target = $region32
        $region31: #{tpu_custom_call.1} parent=27 // pred_region
          %p225 = scmp.lt.s32.totalorder %s21, 1
          %s226 = scalar_select %p225, %s21, 1
          %s227 = smul.addr %s226, 32
          %s228 = smul.addr %s227, 4
          %s229 = scalar_lea.vmem %s0, %s228
        $region32: #{tpu_custom_call.1} parent=27 // pred_fallthru
          _
        // Predicated region
        $region33: #{tpu_custom_call.1} parent=27 // pred_check
          %p230 = pneg %p72
        $region34: #{tpu_custom_call.1} parent=27 // pred_check_branch
          %232 = sbr.rel (%p230) target = $region36
        $region35: #{tpu_custom_call.1} parent=27 // pred_region
          %p233 = scmp.lt.s32.totalorder %s21, 1
          %s234 = scalar_select %p233, %s21, 1
          %s235 = smul.addr %s234, 32
          %s236 = smul.addr %s235, 4
          %s237 = scalar_lea.vmem %s1, %s236
        $region36: #{tpu_custom_call.1} parent=27 // pred_fallthru
          _
      $region28: #{tpu_custom_call.1} parent=5 // pred_fallthru
        _
      %p238 = scmp.le.s32.totalorder 1, %s14
      %p239 = scmp.lt.s32.totalorder %s14, 3
      %p240 = pnand %p238, %p239
      %p241 = pneg %p240
      // Predicated region
      $region37: #{tpu_custom_call.1} parent=5 // pred_check
        _
      $region38: #{tpu_custom_call.1} parent=5 // pred_check_branch
        %243 = sbr.rel (%p240) target = $region40
      $region39: #{tpu_custom_call.1} parent=5 // pred_region
        %s244 = ssub.s32 %s14, 1
        %p245 = scmp.lt.s32.totalorder %s23, 1
        %s246 = scalar_select %p245, %s23, 1
        %s247 = smul.addr %s246, 32
        %s248 = smul.addr %s247, 4
        %s249 = scalar_lea.vmem %s0, %s248
        %p250 = pneg %p52
        %p251 = pneg %p49
        %p252 = scmp.lt.s32.totalorder %s23, 1
        %s253 = scalar_select %p252, %s23, 1
        %s254 = smul.addr %s253, 32
        %s255 = smul.addr %s254, 4
        %s256 = scalar_lea.vmem %s1, %s255
        %p257 = pneg %p78
        %p258 = pneg %p75
        %p259 = scmp.lt.s32.totalorder %s24, 0
        %s260 = scalar_select %p259, %s24, 0
        %s261 = smul.addr %s260, 4
        %s262 = scalar_lea.vmem %s2, %s261
        %p263 = pneg %p104
        %p264 = pneg %p101
        %p265 = scmp.lt.s32.totalorder %s24, 0
        %s266 = scalar_select %p265, %s24, 0
        %s267 = scalar_lea.vmem %s3, %s266
        %p268 = pneg %p130
        %p269 = pneg %p127
        %p270 = scmp.lt.s32.totalorder %s24, 0
        %s271 = scalar_select %p270, %s24, 0
        %s272 = scalar_lea.vmem %s4, %s271
        %p273 = pneg %p156
        %p274 = pneg %p153
        %p275 = pneg %p184
        %p276 = pneg %p181
        %s277 = sand.u32 %s171, 1
        %s278 = scalar_lea.sflag [#allocation3], %s277
        %s279 = sand.u32 %s171, 1
        %s280 = smul.addr %s279, 128
        %s281 = scalar_lea.vmem [#allocation2], %s280
        %p282 = scmp.lt.s32.totalorder %s23, 1
        %s283 = scalar_select %p282, %s23, 1
        %s284 = smul.addr %s283, 32
        %s285 = smul.addr %s284, 4
        %s286 = scalar_lea.vmem %s0, %s285
        %p287 = scmp.lt.s32.totalorder %s23, 1
        %s288 = scalar_select %p287, %s23, 1
        %s289 = smul.addr %s288, 32
        %s290 = smul.addr %s289, 4
        %s291 = scalar_lea.vmem %s1, %s290
        %p292 = scmp.lt.s32.totalorder %s24, 0
        %s293 = scalar_select %p292, %s24, 0
        %s294 = smul.addr %s293, 4
        %s295 = scalar_lea.vmem %s2, %s294
        %p296 = scmp.lt.s32.totalorder %s24, 0
        %s297 = scalar_select %p296, %s24, 0
        %s298 = scalar_lea.vmem %s3, %s297
        %p299 = scmp.lt.s32.totalorder %s24, 0
        %s300 = scalar_select %p299, %s24, 0
        %s301 = scalar_lea.vmem %s4, %s300
        %v303 = vld [vmem:[%s286] sm:$0xf]
        %v304 = vld [vmem:[%s286 + $0x4] sm:$0xf]
        %v305 = vld [vmem:[%s286 + $0x8] sm:$0xf]
        %v306 = vld [vmem:[%s286 + $0xc] sm:$0xf]
        %v307 = vld [vmem:[%s286 + $0x10] sm:$0xf]
        %v308 = vld [vmem:[%s286 + $0x14] sm:$0xf]
        %v309 = vld [vmem:[%s286 + $0x18] sm:$0xf]
        %v310 = vld [vmem:[%s286 + $0x1c] sm:$0xf]
        %v311 = vld [vmem:[%s286 + $0x20] sm:$0xf]
        %v312 = vld [vmem:[%s286 + $0x24] sm:$0xf]
        %v313 = vld [vmem:[%s286 + $0x28] sm:$0xf]
        %v314 = vld [vmem:[%s286 + $0x2c] sm:$0xf]
        %v315 = vld [vmem:[%s286 + $0x30] sm:$0xf]
        %v316 = vld [vmem:[%s286 + $0x34] sm:$0xf]
        %v317 = vld [vmem:[%s286 + $0x38] sm:$0xf]
        %v318 = vld [vmem:[%s286 + $0x3c] sm:$0xf]
        %v319 = vld [vmem:[%s286 + $0x40] sm:$0xf]
        %v320 = vld [vmem:[%s286 + $0x44] sm:$0xf]
        %v321 = vld [vmem:[%s286 + $0x48] sm:$0xf]
        %v322 = vld [vmem:[%s286 + $0x4c] sm:$0xf]
        %v323 = vld [vmem:[%s286 + $0x50] sm:$0xf]
        %v324 = vld [vmem:[%s286 + $0x54] sm:$0xf]
        %v325 = vld [vmem:[%s286 + $0x58] sm:$0xf]
        %v326 = vld [vmem:[%s286 + $0x5c] sm:$0xf]
        %v327 = vld [vmem:[%s286 + $0x60] sm:$0xf]
        %v328 = vld [vmem:[%s286 + $0x64] sm:$0xf]
        %v329 = vld [vmem:[%s286 + $0x68] sm:$0xf]
        %v330 = vld [vmem:[%s286 + $0x6c] sm:$0xf]
        %v331 = vld [vmem:[%s286 + $0x70] sm:$0xf]
        %v332 = vld [vmem:[%s286 + $0x74] sm:$0xf]
        %v333 = vld [vmem:[%s286 + $0x78] sm:$0xf]
        %v334 = vld [vmem:[%s286 + $0x7c] sm:$0xf]
        %v367 = vunpack.c.l.b16 %v303
        %v368 = vunpack.c.l.b16 %v304
        %v369 = vunpack.c.l.b16 %v305
        %v370 = vunpack.c.l.b16 %v306
        %v371 = vunpack.c.l.b16 %v307
        %v372 = vunpack.c.l.b16 %v308
        %v373 = vunpack.c.l.b16 %v309
        %v374 = vunpack.c.l.b16 %v310
        %v375 = vunpack.c.l.b16 %v311
        %v376 = vunpack.c.l.b16 %v312
        %v377 = vunpack.c.l.b16 %v313
        %v378 = vunpack.c.l.b16 %v314
        %v379 = vunpack.c.l.b16 %v315
        %v380 = vunpack.c.l.b16 %v316
        %v381 = vunpack.c.l.b16 %v317
        %v382 = vunpack.c.l.b16 %v318
        %v383 = vunpack.c.l.b16 %v319
        %v384 = vunpack.c.l.b16 %v320
        %v385 = vunpack.c.l.b16 %v321
        %v386 = vunpack.c.l.b16 %v322
        %v387 = vunpack.c.l.b16 %v323
        %v388 = vunpack.c.l.b16 %v324
        %v389 = vunpack.c.l.b16 %v325
        %v390 = vunpack.c.l.b16 %v326
        %v391 = vunpack.c.l.b16 %v327
        %v392 = vunpack.c.l.b16 %v328
        %v393 = vunpack.c.l.b16 %v329
        %v394 = vunpack.c.l.b16 %v330
        %v395 = vunpack.c.l.b16 %v331
        %v396 = vunpack.c.l.b16 %v332
        %v397 = vunpack.c.l.b16 %v333
        %v398 = vunpack.c.l.b16 %v334
        %v399 = vpack.c.b16 %v368, %v367
        %v400 = vpack.c.b16 %v370, %v369
        %v401 = vpack.c.b16 %v372, %v371
        %v402 = vpack.c.b16 %v374, %v373
        %v403 = vpack.c.b16 %v376, %v375
        %v404 = vpack.c.b16 %v378, %v377
        %v405 = vpack.c.b16 %v380, %v379
        %v406 = vpack.c.b16 %v382, %v381
        %v407 = vpack.c.b16 %v384, %v383
        %v408 = vpack.c.b16 %v386, %v385
        %v409 = vpack.c.b16 %v388, %v387
        %v410 = vpack.c.b16 %v390, %v389
        %v411 = vpack.c.b16 %v392, %v391
        %v412 = vpack.c.b16 %v394, %v393
        %v413 = vpack.c.b16 %v396, %v395
        %v414 = vpack.c.b16 %v398, %v397
        %v416 = vshrl.u32 0, 16
        %v418 = vrot.slane %v416, 7
        %v419 = vshll.u32 0, 16
        %v421 = vor.u32 %v418, %v419
        %v423 = vshrl.u32 %v399, 16
        %v425 = vrot.slane %v423, 7
        %v426 = vshll.u32 %v399, 16
        %v428 = vor.u32 %v425, %v426
        %v430 = vshrl.u32 %v400, 16
        %v432 = vrot.slane %v430, 7
        %v433 = vshll.u32 %v400, 16
        %v435 = vor.u32 %v432, %v433
        %v437 = vshrl.u32 %v401, 16
        %v439 = vrot.slane %v437, 7
        %v440 = vshll.u32 %v401, 16
        %v442 = vor.u32 %v439, %v440
        %v444 = vshrl.u32 %v402, 16
        %v446 = vrot.slane %v444, 7
        %v447 = vshll.u32 %v402, 16
        %v449 = vor.u32 %v446, %v447
        %v451 = vshrl.u32 %v403, 16
        %v453 = vrot.slane %v451, 7
        %v454 = vshll.u32 %v403, 16
        %v456 = vor.u32 %v453, %v454
        %v458 = vshrl.u32 %v404, 16
        %v460 = vrot.slane %v458, 7
        %v461 = vshll.u32 %v404, 16
        %v463 = vor.u32 %v460, %v461
        %v465 = vshrl.u32 %v405, 16
        %v467 = vrot.slane %v465, 7
        %v468 = vshll.u32 %v405, 16
        %v470 = vor.u32 %v467, %v468
        %v472 = vshrl.u32 %v406, 16
        %v474 = vrot.slane %v472, 7
        %v475 = vshll.u32 %v406, 16
        %v477 = vor.u32 %v474, %v475
        %v479 = vshrl.u32 %v407, 16
        %v481 = vrot.slane %v479, 7
        %v482 = vshll.u32 %v407, 16
        %v484 = vor.u32 %v481, %v482
        %v486 = vshrl.u32 %v408, 16
        %v488 = vrot.slane %v486, 7
        %v489 = vshll.u32 %v408, 16
        %v491 = vor.u32 %v488, %v489
        %v493 = vshrl.u32 %v409, 16
        %v495 = vrot.slane %v493, 7
        %v496 = vshll.u32 %v409, 16
        %v498 = vor.u32 %v495, %v496
        %v500 = vshrl.u32 %v410, 16
        %v502 = vrot.slane %v500, 7
        %v503 = vshll.u32 %v410, 16
        %v505 = vor.u32 %v502, %v503
        %v507 = vshrl.u32 %v411, 16
        %v509 = vrot.slane %v507, 7
        %v510 = vshll.u32 %v411, 16
        %v512 = vor.u32 %v509, %v510
        %v514 = vshrl.u32 %v412, 16
        %v516 = vrot.slane %v514, 7
        %v517 = vshll.u32 %v412, 16
        %v519 = vor.u32 %v516, %v517
        %v521 = vshrl.u32 %v413, 16
        %v523 = vrot.slane %v521, 7
        %v524 = vshll.u32 %v413, 16
        %v526 = vor.u32 %v523, %v524
        %v528 = vshrl.u32 %v414, 16
        %v530 = vrot.slane %v528, 7
        %v531 = vshll.u32 %v414, 16
        %v533 = vor.u32 %v530, %v531
        %vm568 = vcmask 1040384
        %vm569 = vsmask.f32 256
        %vm570 = vmand %vm568, %vm569
        %v571 = vsel %vm570, 0, %v421
        %v572 = vsel %vm570, 0, %v428
        %v573 = vsel %vm570, 0, %v435
        %v574 = vsel %vm570, 0, %v442
        %v575 = vsel %vm570, 0, %v449
        %v576 = vsel %vm570, 0, %v456
        %v577 = vsel %vm570, 0, %v463
        %v578 = vsel %vm570, 0, %v470
        %v579 = vsel %vm570, 0, %v477
        %v580 = vsel %vm570, 0, %v484
        %v581 = vsel %vm570, 0, %v491
        %v582 = vsel %vm570, 0, %v498
        %v583 = vsel %vm570, 0, %v505
        %v584 = vsel %vm570, 0, %v512
        %v585 = vsel %vm570, 0, %v519
        %v586 = vsel %vm570, 0, %v526
        %v587 = vsel %vm570, 0, %v533
        %v588 = vsel %vm570, %v418, 0
        %v589 = vsel %vm570, %v425, 0
        %v590 = vsel %vm570, %v432, 0
        %v591 = vsel %vm570, %v439, 0
        %v592 = vsel %vm570, %v446, 0
        %v593 = vsel %vm570, %v453, 0
        %v594 = vsel %vm570, %v460, 0
        %v595 = vsel %vm570, %v467, 0
        %v596 = vsel %vm570, %v474, 0
        %v597 = vsel %vm570, %v481, 0
        %v598 = vsel %vm570, %v488, 0
        %v599 = vsel %vm570, %v495, 0
        %v600 = vsel %vm570, %v502, 0
        %v601 = vsel %vm570, %v509, 0
        %v602 = vsel %vm570, %v516, 0
        %v603 = vsel %vm570, %v523, 0
        %v604 = vsel %vm570, %v530, 0
        %v605 = vld [vmem:[%s291] sm:$0xf]
        %v606 = vld [vmem:[%s291 + $0x4] sm:$0xf]
        %v607 = vld [vmem:[%s291 + $0x8] sm:$0xf]
        %v608 = vld [vmem:[%s291 + $0xc] sm:$0xf]
        %v609 = vld [vmem:[%s291 + $0x10] sm:$0xf]
        %v610 = vld [vmem:[%s291 + $0x14] sm:$0xf]
        %v611 = vld [vmem:[%s291 + $0x18] sm:$0xf]
        %v612 = vld [vmem:[%s291 + $0x1c] sm:$0xf]
        %v613 = vld [vmem:[%s291 + $0x20] sm:$0xf]
        %v614 = vld [vmem:[%s291 + $0x24] sm:$0xf]
        %v615 = vld [vmem:[%s291 + $0x28] sm:$0xf]
        %v616 = vld [vmem:[%s291 + $0x2c] sm:$0xf]
        %v617 = vld [vmem:[%s291 + $0x30] sm:$0xf]
        %v618 = vld [vmem:[%s291 + $0x34] sm:$0xf]
        %v619 = vld [vmem:[%s291 + $0x38] sm:$0xf]
        %v620 = vld [vmem:[%s291 + $0x3c] sm:$0xf]
        %v621 = vld [vmem:[%s291 + $0x40] sm:$0xf]
        %v622 = vld [vmem:[%s291 + $0x44] sm:$0xf]
        %v623 = vld [vmem:[%s291 + $0x48] sm:$0xf]
        %v624 = vld [vmem:[%s291 + $0x4c] sm:$0xf]
        %v625 = vld [vmem:[%s291 + $0x50] sm:$0xf]
        %v626 = vld [vmem:[%s291 + $0x54] sm:$0xf]
        %v627 = vld [vmem:[%s291 + $0x58] sm:$0xf]
        %v628 = vld [vmem:[%s291 + $0x5c] sm:$0xf]
        %v629 = vld [vmem:[%s291 + $0x60] sm:$0xf]
        %v630 = vld [vmem:[%s291 + $0x64] sm:$0xf]
        %v631 = vld [vmem:[%s291 + $0x68] sm:$0xf]
        %v632 = vld [vmem:[%s291 + $0x6c] sm:$0xf]
        %v633 = vld [vmem:[%s291 + $0x70] sm:$0xf]
        %v634 = vld [vmem:[%s291 + $0x74] sm:$0xf]
        %v635 = vld [vmem:[%s291 + $0x78] sm:$0xf]
        %v636 = vld [vmem:[%s291 + $0x7c] sm:$0xf]
        %v669 = vunpack.c.l.b16 %v605
        %v670 = vunpack.c.l.b16 %v606
        %v671 = vunpack.c.l.b16 %v607
        %v672 = vunpack.c.l.b16 %v608
        %v673 = vunpack.c.l.b16 %v609
        %v674 = vunpack.c.l.b16 %v610
        %v675 = vunpack.c.l.b16 %v611
        %v676 = vunpack.c.l.b16 %v612
        %v677 = vunpack.c.l.b16 %v613
        %v678 = vunpack.c.l.b16 %v614
        %v679 = vunpack.c.l.b16 %v615
        %v680 = vunpack.c.l.b16 %v616
        %v681 = vunpack.c.l.b16 %v617
        %v682 = vunpack.c.l.b16 %v618
        %v683 = vunpack.c.l.b16 %v619
        %v684 = vunpack.c.l.b16 %v620
        %v685 = vunpack.c.l.b16 %v621
        %v686 = vunpack.c.l.b16 %v622
        %v687 = vunpack.c.l.b16 %v623
        %v688 = vunpack.c.l.b16 %v624
        %v689 = vunpack.c.l.b16 %v625
        %v690 = vunpack.c.l.b16 %v626
        %v691 = vunpack.c.l.b16 %v627
        %v692 = vunpack.c.l.b16 %v628
        %v693 = vunpack.c.l.b16 %v629
        %v694 = vunpack.c.l.b16 %v630
        %v695 = vunpack.c.l.b16 %v631
        %v696 = vunpack.c.l.b16 %v632
        %v697 = vunpack.c.l.b16 %v633
        %v698 = vunpack.c.l.b16 %v634
        %v699 = vunpack.c.l.b16 %v635
        %v700 = vunpack.c.l.b16 %v636
        %v701 = vpack.c.b16 %v670, %v669
        %v702 = vpack.c.b16 %v672, %v671
        %v703 = vpack.c.b16 %v674, %v673
        %v704 = vpack.c.b16 %v676, %v675
        %v705 = vpack.c.b16 %v678, %v677
        %v706 = vpack.c.b16 %v680, %v679
        %v707 = vpack.c.b16 %v682, %v681
        %v708 = vpack.c.b16 %v684, %v683
        %v709 = vpack.c.b16 %v686, %v685
        %v710 = vpack.c.b16 %v688, %v687
        %v711 = vpack.c.b16 %v690, %v689
        %v712 = vpack.c.b16 %v692, %v691
        %v713 = vpack.c.b16 %v694, %v693
        %v714 = vpack.c.b16 %v696, %v695
        %v715 = vpack.c.b16 %v698, %v697
        %v716 = vpack.c.b16 %v700, %v699
        %v718 = vshrl.u32 %v701, 16
        %v720 = vrot.slane %v718, 7
        %v721 = vshll.u32 %v701, 16
        %v723 = vor.u32 %v720, %v721
        %v725 = vshrl.u32 %v702, 16
        %v727 = vrot.slane %v725, 7
        %v728 = vshll.u32 %v702, 16
        %v730 = vor.u32 %v727, %v728
        %v732 = vshrl.u32 %v703, 16
        %v734 = vrot.slane %v732, 7
        %v735 = vshll.u32 %v703, 16
        %v737 = vor.u32 %v734, %v735
        %v739 = vshrl.u32 %v704, 16
        %v741 = vrot.slane %v739, 7
        %v742 = vshll.u32 %v704, 16
        %v744 = vor.u32 %v741, %v742
        %v746 = vshrl.u32 %v705, 16
        %v748 = vrot.slane %v746, 7
        %v749 = vshll.u32 %v705, 16
        %v751 = vor.u32 %v748, %v749
        %v753 = vshrl.u32 %v706, 16
        %v755 = vrot.slane %v753, 7
        %v756 = vshll.u32 %v706, 16
        %v758 = vor.u32 %v755, %v756
        %v760 = vshrl.u32 %v707, 16
        %v762 = vrot.slane %v760, 7
        %v763 = vshll.u32 %v707, 16
        %v765 = vor.u32 %v762, %v763
        %v767 = vshrl.u32 %v708, 16
        %v769 = vrot.slane %v767, 7
        %v770 = vshll.u32 %v708, 16
        %v772 = vor.u32 %v769, %v770
        %v774 = vshrl.u32 %v709, 16
        %v776 = vrot.slane %v774, 7
        %v777 = vshll.u32 %v709, 16
        %v779 = vor.u32 %v776, %v777
        %v781 = vshrl.u32 %v710, 16
        %v783 = vrot.slane %v781, 7
        %v784 = vshll.u32 %v710, 16
        %v786 = vor.u32 %v783, %v784
        %v788 = vshrl.u32 %v711, 16
        %v790 = vrot.slane %v788, 7
        %v791 = vshll.u32 %v711, 16
        %v793 = vor.u32 %v790, %v791
        %v795 = vshrl.u32 %v712, 16
        %v797 = vrot.slane %v795, 7
        %v798 = vshll.u32 %v712, 16
        %v800 = vor.u32 %v797, %v798
        %v802 = vshrl.u32 %v713, 16
        %v804 = vrot.slane %v802, 7
        %v805 = vshll.u32 %v713, 16
        %v807 = vor.u32 %v804, %v805
        %v809 = vshrl.u32 %v714, 16
        %v811 = vrot.slane %v809, 7
        %v812 = vshll.u32 %v714, 16
        %v814 = vor.u32 %v811, %v812
        %v816 = vshrl.u32 %v715, 16
        %v818 = vrot.slane %v816, 7
        %v819 = vshll.u32 %v715, 16
        %v821 = vor.u32 %v818, %v819
        %v823 = vshrl.u32 %v716, 16
        %v825 = vrot.slane %v823, 7
        %v826 = vshll.u32 %v716, 16
        %v828 = vor.u32 %v825, %v826
        %v861 = vsel %vm570, 0, %v723
        %v862 = vsel %vm570, 0, %v730
        %v863 = vsel %vm570, 0, %v737
        %v864 = vsel %vm570, 0, %v744
        %v865 = vsel %vm570, 0, %v751
        %v866 = vsel %vm570, 0, %v758
        %v867 = vsel %vm570, 0, %v765
        %v868 = vsel %vm570, 0, %v772
        %v869 = vsel %vm570, 0, %v779
        %v870 = vsel %vm570, 0, %v786
        %v871 = vsel %vm570, 0, %v793
        %v872 = vsel %vm570, 0, %v800
        %v873 = vsel %vm570, 0, %v807
        %v874 = vsel %vm570, 0, %v814
        %v875 = vsel %vm570, 0, %v821
        %v876 = vsel %vm570, 0, %v828
        %v877 = vsel %vm570, %v720, 0
        %v878 = vsel %vm570, %v727, 0
        %v879 = vsel %vm570, %v734, 0
        %v880 = vsel %vm570, %v741, 0
        %v881 = vsel %vm570, %v748, 0
        %v882 = vsel %vm570, %v755, 0
        %v883 = vsel %vm570, %v762, 0
        %v884 = vsel %vm570, %v769, 0
        %v885 = vsel %vm570, %v776, 0
        %v886 = vsel %vm570, %v783, 0
        %v887 = vsel %vm570, %v790, 0
        %v888 = vsel %vm570, %v797, 0
        %v889 = vsel %vm570, %v804, 0
        %v890 = vsel %vm570, %v811, 0
        %v891 = vsel %vm570, %v818, 0
        %v892 = vsel %vm570, %v825, 0
        %v893 = vld [vmem:[%s295] sm:$0xf]
        %v894 = vld [vmem:[%s295 + $0x4] sm:$0xf]
        %v895 = vld [vmem:[%s295 + $0x8] sm:$0xf]
        %v896 = vld [vmem:[%s295 + $0xc] sm:$0xf]
        %v897 = vld [vmem:[%s295 + $0x10] sm:$0xf]
        %v898 = vld [vmem:[%s295 + $0x14] sm:$0xf]
        %v899 = vld [vmem:[%s295 + $0x18] sm:$0xf]
        %v900 = vld [vmem:[%s295 + $0x1c] sm:$0xf]
        %v901 = vld [vmem:[%s295 + $0x20] sm:$0xf]
        %v902 = vld [vmem:[%s298] sm:$0x1]
        %v903 = vld [vmem:[%s301] sm:$0x1]
        %912 = vrot.lane.b32.xlu0 %v571, 4
        %v913 = vpop.permute.xlu0 %912
        %914 = vrot.lane.b32.xlu0 %v861, 4
        %v915 = vpop.permute.xlu0 %914
        %916 = vrot.lane.b32.xlu0 %v862, 4
        %v917 = vpop.permute.xlu0 %916
        %918 = vrot.lane.b32.xlu0 %v863, 4
        %v919 = vpop.permute.xlu0 %918
        %920 = vrot.lane.b32.xlu0 %v864, 4
        %v921 = vpop.permute.xlu0 %920
        %922 = vrot.lane.b32.xlu0 %v865, 4
        %v923 = vpop.permute.xlu0 %922
        %924 = vrot.lane.b32.xlu0 %v866, 4
        %v925 = vpop.permute.xlu0 %924
        %926 = vrot.lane.b32.xlu0 %v867, 4
        %v927 = vpop.permute.xlu0 %926
        %vm928 = vsmask.f32 7424
        %v930 = vshrl.u32 %v571, 16
        %v932 = vshll.u32 %v571, 16
        %v934 = vrot.slane %v932, 1
        %v935 = vor.u32 %v930, %v934
        %v937 = vshll.u32 %v588, 16
        %v939 = vrot.slane %v937, 1
        %v940 = vsel %vm928, %v935, %v939
        %v942 = vshrl.u32 %v572, 16
        %v944 = vshll.u32 %v572, 16
        %v946 = vrot.slane %v944, 1
        %v947 = vor.u32 %v942, %v946
        %v949 = vshll.u32 %v589, 16
        %v951 = vrot.slane %v949, 1
        %v952 = vsel %vm928, %v947, %v951
        %v954 = vshrl.u32 %v573, 16
        %v956 = vshll.u32 %v573, 16
        %v958 = vrot.slane %v956, 1
        %v959 = vor.u32 %v954, %v958
        %v961 = vshll.u32 %v590, 16
        %v963 = vrot.slane %v961, 1
        %v964 = vsel %vm928, %v959, %v963
        %v966 = vshrl.u32 %v574, 16
        %v968 = vshll.u32 %v574, 16
        %v970 = vrot.slane %v968, 1
        %v971 = vor.u32 %v966, %v970
        %v973 = vshll.u32 %v591, 16
        %v975 = vrot.slane %v973, 1
        %v976 = vsel %vm928, %v971, %v975
        %v978 = vshrl.u32 %v575, 16
        %v980 = vshll.u32 %v575, 16
        %v982 = vrot.slane %v980, 1
        %v983 = vor.u32 %v978, %v982
        %v985 = vshll.u32 %v592, 16
        %v987 = vrot.slane %v985, 1
        %v988 = vsel %vm928, %v983, %v987
        %v990 = vshrl.u32 %v576, 16
        %v992 = vshll.u32 %v576, 16
        %v994 = vrot.slane %v992, 1
        %v995 = vor.u32 %v990, %v994
        %v997 = vshll.u32 %v593, 16
        %v999 = vrot.slane %v997, 1
        %v1000 = vsel %vm928, %v995, %v999
        %v1002 = vshrl.u32 %v577, 16
        %v1004 = vshll.u32 %v577, 16
        %v1006 = vrot.slane %v1004, 1
        %v1007 = vor.u32 %v1002, %v1006
        %v1009 = vshll.u32 %v594, 16
        %v1011 = vrot.slane %v1009, 1
        %v1012 = vsel %vm928, %v1007, %v1011
        %v1014 = vshrl.u32 %v578, 16
        %v1016 = vshll.u32 %v578, 16
        %v1018 = vrot.slane %v1016, 1
        %v1019 = vor.u32 %v1014, %v1018
        %v1021 = vshll.u32 %v595, 16
        %v1023 = vrot.slane %v1021, 1
        %v1024 = vsel %vm928, %v1019, %v1023
        %1025 = vrot.lane.b32.xlu0 %v940, 8
        %v1026 = vpop.permute.xlu0 %1025
        %1027 = vrot.lane.b32.xlu0 %v952, 8
        %v1028 = vpop.permute.xlu0 %1027
        %1029 = vrot.lane.b32.xlu0 %v964, 8
        %v1030 = vpop.permute.xlu0 %1029
        %1031 = vrot.lane.b32.xlu0 %v976, 8
        %v1032 = vpop.permute.xlu0 %1031
        %1033 = vrot.lane.b32.xlu0 %v988, 8
        %v1034 = vpop.permute.xlu0 %1033
        %1035 = vrot.lane.b32.xlu0 %v1000, 8
        %v1036 = vpop.permute.xlu0 %1035
        %1037 = vrot.lane.b32.xlu0 %v1012, 8
        %v1038 = vpop.permute.xlu0 %1037
        %1039 = vrot.lane.b32.xlu0 %v1024, 8
        %v1040 = vpop.permute.xlu0 %1039
        %v1042 = vshrl.u32 %v861, 16
        %v1044 = vshll.u32 %v861, 16
        %v1046 = vrot.slane %v1044, 1
        %v1047 = vor.u32 %v1042, %v1046
        %v1049 = vshll.u32 %v877, 16
        %v1051 = vrot.slane %v1049, 1
        %v1052 = vsel %vm928, %v1047, %v1051
        %v1054 = vshrl.u32 %v862, 16
        %v1056 = vshll.u32 %v862, 16
        %v1058 = vrot.slane %v1056, 1
        %v1059 = vor.u32 %v1054, %v1058
        %v1061 = vshll.u32 %v878, 16
        %v1063 = vrot.slane %v1061, 1
        %v1064 = vsel %vm928, %v1059, %v1063
        %v1066 = vshrl.u32 %v863, 16
        %v1068 = vshll.u32 %v863, 16
        %v1070 = vrot.slane %v1068, 1
        %v1071 = vor.u32 %v1066, %v1070
        %v1073 = vshll.u32 %v879, 16
        %v1075 = vrot.slane %v1073, 1
        %v1076 = vsel %vm928, %v1071, %v1075
        %v1078 = vshrl.u32 %v864, 16
        %v1080 = vshll.u32 %v864, 16
        %v1082 = vrot.slane %v1080, 1
        %v1083 = vor.u32 %v1078, %v1082
        %v1085 = vshll.u32 %v880, 16
        %v1087 = vrot.slane %v1085, 1
        %v1088 = vsel %vm928, %v1083, %v1087
        %v1090 = vshrl.u32 %v865, 16
        %v1092 = vshll.u32 %v865, 16
        %v1094 = vrot.slane %v1092, 1
        %v1095 = vor.u32 %v1090, %v1094
        %v1097 = vshll.u32 %v881, 16
        %v1099 = vrot.slane %v1097, 1
        %v1100 = vsel %vm928, %v1095, %v1099
        %v1102 = vshrl.u32 %v866, 16
        %v1104 = vshll.u32 %v866, 16
        %v1106 = vrot.slane %v1104, 1
        %v1107 = vor.u32 %v1102, %v1106
        %v1109 = vshll.u32 %v882, 16
        %v1111 = vrot.slane %v1109, 1
        %v1112 = vsel %vm928, %v1107, %v1111
        %v1114 = vshrl.u32 %v867, 16
        %v1116 = vshll.u32 %v867, 16
        %v1118 = vrot.slane %v1116, 1
        %v1119 = vor.u32 %v1114, %v1118
        %v1121 = vshll.u32 %v883, 16
        %v1123 = vrot.slane %v1121, 1
        %v1124 = vsel %vm928, %v1119, %v1123
        %1125 = vrot.lane.b32.xlu0 %v940, 12
        %v1126 = vpop.permute.xlu0 %1125
        %1127 = vrot.lane.b32.xlu0 %v1052, 12
        %v1128 = vpop.permute.xlu0 %1127
        %1129 = vrot.lane.b32.xlu0 %v1064, 12
        %v1130 = vpop.permute.xlu0 %1129
        %1131 = vrot.lane.b32.xlu0 %v1076, 12
        %v1132 = vpop.permute.xlu0 %1131
        %1133 = vrot.lane.b32.xlu0 %v1088, 12
        %v1134 = vpop.permute.xlu0 %1133
        %1135 = vrot.lane.b32.xlu0 %v1100, 12
        %v1136 = vpop.permute.xlu0 %1135
        %1137 = vrot.lane.b32.xlu0 %v1112, 12
        %v1138 = vpop.permute.xlu0 %1137
        %1139 = vrot.lane.b32.xlu0 %v1124, 12
        %v1140 = vpop.permute.xlu0 %1139
        %vm1156 = vcmask 1046528
        %v1157 = vrot.slane %v571, 1
        %v1158 = vrot.slane %v588, 1
        %v1159 = vsel %vm1156, %v1157, %v1158
        %v1160 = vrot.slane %v572, 1
        %v1161 = vrot.slane %v589, 1
        %v1162 = vsel %vm1156, %v1160, %v1161
        %v1163 = vrot.slane %v573, 1
        %v1164 = vrot.slane %v590, 1
        %v1165 = vsel %vm1156, %v1163, %v1164
        %v1166 = vrot.slane %v574, 1
        %v1167 = vrot.slane %v591, 1
        %v1168 = vsel %vm1156, %v1166, %v1167
        %v1169 = vrot.slane %v575, 1
        %v1170 = vrot.slane %v592, 1
        %v1171 = vsel %vm1156, %v1169, %v1170
        %v1172 = vrot.slane %v576, 1
        %v1173 = vrot.slane %v593, 1
        %v1174 = vsel %vm1156, %v1172, %v1173
        %v1175 = vrot.slane %v577, 1
        %v1176 = vrot.slane %v594, 1
        %v1177 = vsel %vm1156, %v1175, %v1176
        %v1178 = vrot.slane %v578, 1
        %v1179 = vrot.slane %v595, 1
        %v1180 = vsel %vm1156, %v1178, %v1179
        %1181 = vrot.lane.b32.xlu0 %v1159, 16
        %v1182 = vpop.permute.xlu0 %1181
        %1183 = vrot.lane.b32.xlu0 %v1162, 16
        %v1184 = vpop.permute.xlu0 %1183
        %1185 = vrot.lane.b32.xlu0 %v1165, 16
        %v1186 = vpop.permute.xlu0 %1185
        %1187 = vrot.lane.b32.xlu0 %v1168, 16
        %v1188 = vpop.permute.xlu0 %1187
        %1189 = vrot.lane.b32.xlu0 %v1171, 16
        %v1190 = vpop.permute.xlu0 %1189
        %1191 = vrot.lane.b32.xlu0 %v1174, 16
        %v1192 = vpop.permute.xlu0 %1191
        %1193 = vrot.lane.b32.xlu0 %v1177, 16
        %v1194 = vpop.permute.xlu0 %1193
        %1195 = vrot.lane.b32.xlu0 %v1180, 16
        %v1196 = vpop.permute.xlu0 %1195
        %v1204 = vrot.slane %v861, 1
        %v1205 = vrot.slane %v877, 1
        %v1206 = vsel %vm1156, %v1204, %v1205
        %v1207 = vrot.slane %v862, 1
        %v1208 = vrot.slane %v878, 1
        %v1209 = vsel %vm1156, %v1207, %v1208
        %v1210 = vrot.slane %v863, 1
        %v1211 = vrot.slane %v879, 1
        %v1212 = vsel %vm1156, %v1210, %v1211
        %v1213 = vrot.slane %v864, 1
        %v1214 = vrot.slane %v880, 1
        %v1215 = vsel %vm1156, %v1213, %v1214
        %v1216 = vrot.slane %v865, 1
        %v1217 = vrot.slane %v881, 1
        %v1218 = vsel %vm1156, %v1216, %v1217
        %v1219 = vrot.slane %v866, 1
        %v1220 = vrot.slane %v882, 1
        %v1221 = vsel %vm1156, %v1219, %v1220
        %v1222 = vrot.slane %v867, 1
        %v1223 = vrot.slane %v883, 1
        %v1224 = vsel %vm1156, %v1222, %v1223
        %1225 = vrot.lane.b32.xlu0 %v1159, 20
        %v1226 = vpop.permute.xlu0 %1225
        %1227 = vrot.lane.b32.xlu0 %v1206, 20
        %v1228 = vpop.permute.xlu0 %1227
        %1229 = vrot.lane.b32.xlu0 %v1209, 20
        %v1230 = vpop.permute.xlu0 %1229
        %1231 = vrot.lane.b32.xlu0 %v1212, 20
        %v1232 = vpop.permute.xlu0 %1231
        %1233 = vrot.lane.b32.xlu0 %v1215, 20
        %v1234 = vpop.permute.xlu0 %1233
        %1235 = vrot.lane.b32.xlu0 %v1218, 20
        %v1236 = vpop.permute.xlu0 %1235
        %1237 = vrot.lane.b32.xlu0 %v1221, 20
        %v1238 = vpop.permute.xlu0 %1237
        %1239 = vrot.lane.b32.xlu0 %v1224, 20
        %v1240 = vpop.permute.xlu0 %1239
        %1242 = vrot.lane.b32.xlu0 %v572, 24
        %v1243 = vpop.permute.xlu0 %1242
        %1244 = vrot.lane.b32.xlu0 %v573, 24
        %v1245 = vpop.permute.xlu0 %1244
        %1246 = vrot.lane.b32.xlu0 %v574, 24
        %v1247 = vpop.permute.xlu0 %1246
        %1248 = vrot.lane.b32.xlu0 %v575, 24
        %v1249 = vpop.permute.xlu0 %1248
        %1250 = vrot.lane.b32.xlu0 %v576, 24
        %v1251 = vpop.permute.xlu0 %1250
        %1252 = vrot.lane.b32.xlu0 %v577, 24
        %v1253 = vpop.permute.xlu0 %1252
        %1254 = vrot.lane.b32.xlu0 %v578, 24
        %v1255 = vpop.permute.xlu0 %1254
        %1256 = vrot.lane.b32.xlu0 %v579, 24
        %v1257 = vpop.permute.xlu0 %1256
        %1259 = vrot.lane.b32.xlu0 %v861, 28
        %v1260 = vpop.permute.xlu0 %1259
        %1261 = vrot.lane.b32.xlu0 %v862, 28
        %v1262 = vpop.permute.xlu0 %1261
        %1263 = vrot.lane.b32.xlu0 %v863, 28
        %v1264 = vpop.permute.xlu0 %1263
        %1265 = vrot.lane.b32.xlu0 %v864, 28
        %v1266 = vpop.permute.xlu0 %1265
        %1267 = vrot.lane.b32.xlu0 %v865, 28
        %v1268 = vpop.permute.xlu0 %1267
        %1269 = vrot.lane.b32.xlu0 %v866, 28
        %v1270 = vpop.permute.xlu0 %1269
        %1271 = vrot.lane.b32.xlu0 %v867, 28
        %v1272 = vpop.permute.xlu0 %1271
        %1273 = vrot.lane.b32.xlu0 %v868, 28
        %v1274 = vpop.permute.xlu0 %1273
        %v1276 = vshrl.u32 %v579, 16
        %v1278 = vshll.u32 %v579, 16
        %v1280 = vrot.slane %v1278, 1
        %v1281 = vor.u32 %v1276, %v1280
        %v1283 = vshll.u32 %v596, 16
        %v1285 = vrot.slane %v1283, 1
        %v1286 = vsel %vm928, %v1281, %v1285
        %1287 = vrot.lane.b32.xlu0 %v952, 32
        %v1288 = vpop.permute.xlu0 %1287
        %1289 = vrot.lane.b32.xlu0 %v964, 32
        %v1290 = vpop.permute.xlu0 %1289
        %1291 = vrot.lane.b32.xlu0 %v976, 32
        %v1292 = vpop.permute.xlu0 %1291
        %1293 = vrot.lane.b32.xlu0 %v988, 32
        %v1294 = vpop.permute.xlu0 %1293
        %1295 = vrot.lane.b32.xlu0 %v1000, 32
        %v1296 = vpop.permute.xlu0 %1295
        %1297 = vrot.lane.b32.xlu0 %v1012, 32
        %v1298 = vpop.permute.xlu0 %1297
        %1299 = vrot.lane.b32.xlu0 %v1024, 32
        %v1300 = vpop.permute.xlu0 %1299
        %1301 = vrot.lane.b32.xlu0 %v1286, 32
        %v1302 = vpop.permute.xlu0 %1301
        %v1304 = vshrl.u32 %v868, 16
        %v1306 = vshll.u32 %v868, 16
        %v1308 = vrot.slane %v1306, 1
        %v1309 = vor.u32 %v1304, %v1308
        %v1311 = vshll.u32 %v884, 16
        %v1313 = vrot.slane %v1311, 1
        %v1314 = vsel %vm928, %v1309, %v1313
        %1315 = vrot.lane.b32.xlu0 %v1052, 36
        %v1316 = vpop.permute.xlu0 %1315
        %1317 = vrot.lane.b32.xlu0 %v1064, 36
        %v1318 = vpop.permute.xlu0 %1317
        %1319 = vrot.lane.b32.xlu0 %v1076, 36
        %v1320 = vpop.permute.xlu0 %1319
        %1321 = vrot.lane.b32.xlu0 %v1088, 36
        %v1322 = vpop.permute.xlu0 %1321
        %1323 = vrot.lane.b32.xlu0 %v1100, 36
        %v1324 = vpop.permute.xlu0 %1323
        %1325 = vrot.lane.b32.xlu0 %v1112, 36
        %v1326 = vpop.permute.xlu0 %1325
        %1327 = vrot.lane.b32.xlu0 %v1124, 36
        %v1328 = vpop.permute.xlu0 %1327
        %1329 = vrot.lane.b32.xlu0 %v1314, 36
        %v1330 = vpop.permute.xlu0 %1329
        %v1332 = vrot.slane %v579, 1
        %v1333 = vrot.slane %v596, 1
        %v1334 = vsel %vm1156, %v1332, %v1333
        %1335 = vrot.lane.b32.xlu0 %v1162, 40
        %v1336 = vpop.permute.xlu0 %1335
        %1337 = vrot.lane.b32.xlu0 %v1165, 40
        %v1338 = vpop.permute.xlu0 %1337
        %1339 = vrot.lane.b32.xlu0 %v1168, 40
        %v1340 = vpop.permute.xlu0 %1339
        %1341 = vrot.lane.b32.xlu0 %v1171, 40
        %v1342 = vpop.permute.xlu0 %1341
        %1343 = vrot.lane.b32.xlu0 %v1174, 40
        %v1344 = vpop.permute.xlu0 %1343
        %1345 = vrot.lane.b32.xlu0 %v1177, 40
        %v1346 = vpop.permute.xlu0 %1345
        %1347 = vrot.lane.b32.xlu0 %v1180, 40
        %v1348 = vpop.permute.xlu0 %1347
        %1349 = vrot.lane.b32.xlu0 %v1334, 40
        %v1350 = vpop.permute.xlu0 %1349
        %v1352 = vrot.slane %v868, 1
        %v1353 = vrot.slane %v884, 1
        %v1354 = vsel %vm1156, %v1352, %v1353
        %1355 = vrot.lane.b32.xlu0 %v1206, 44
        %v1356 = vpop.permute.xlu0 %1355
        %1357 = vrot.lane.b32.xlu0 %v1209, 44
        %v1358 = vpop.permute.xlu0 %1357
        %1359 = vrot.lane.b32.xlu0 %v1212, 44
        %v1360 = vpop.permute.xlu0 %1359
        %1361 = vrot.lane.b32.xlu0 %v1215, 44
        %v1362 = vpop.permute.xlu0 %1361
        %1363 = vrot.lane.b32.xlu0 %v1218, 44
        %v1364 = vpop.permute.xlu0 %1363
        %1365 = vrot.lane.b32.xlu0 %v1221, 44
        %v1366 = vpop.permute.xlu0 %1365
        %1367 = vrot.lane.b32.xlu0 %v1224, 44
        %v1368 = vpop.permute.xlu0 %1367
        %1369 = vrot.lane.b32.xlu0 %v1354, 44
        %v1370 = vpop.permute.xlu0 %1369
        %1372 = vrot.lane.b32.xlu0 %v573, 48
        %v1373 = vpop.permute.xlu0 %1372
        %1374 = vrot.lane.b32.xlu0 %v574, 48
        %v1375 = vpop.permute.xlu0 %1374
        %1376 = vrot.lane.b32.xlu0 %v575, 48
        %v1377 = vpop.permute.xlu0 %1376
        %1378 = vrot.lane.b32.xlu0 %v576, 48
        %v1379 = vpop.permute.xlu0 %1378
        %1380 = vrot.lane.b32.xlu0 %v577, 48
        %v1381 = vpop.permute.xlu0 %1380
        %1382 = vrot.lane.b32.xlu0 %v578, 48
        %v1383 = vpop.permute.xlu0 %1382
        %1384 = vrot.lane.b32.xlu0 %v579, 48
        %v1385 = vpop.permute.xlu0 %1384
        %1386 = vrot.lane.b32.xlu0 %v580, 48
        %v1387 = vpop.permute.xlu0 %1386
        %1389 = vrot.lane.b32.xlu0 %v862, 52
        %v1390 = vpop.permute.xlu0 %1389
        %1391 = vrot.lane.b32.xlu0 %v863, 52
        %v1392 = vpop.permute.xlu0 %1391
        %1393 = vrot.lane.b32.xlu0 %v864, 52
        %v1394 = vpop.permute.xlu0 %1393
        %1395 = vrot.lane.b32.xlu0 %v865, 52
        %v1396 = vpop.permute.xlu0 %1395
        %1397 = vrot.lane.b32.xlu0 %v866, 52
        %v1398 = vpop.permute.xlu0 %1397
        %1399 = vrot.lane.b32.xlu0 %v867, 52
        %v1400 = vpop.permute.xlu0 %1399
        %1401 = vrot.lane.b32.xlu0 %v868, 52
        %v1402 = vpop.permute.xlu0 %1401
        %1403 = vrot.lane.b32.xlu0 %v869, 52
        %v1404 = vpop.permute.xlu0 %1403
        %v1406 = vshrl.u32 %v580, 16
        %v1408 = vshll.u32 %v580, 16
        %v1410 = vrot.slane %v1408, 1
        %v1411 = vor.u32 %v1406, %v1410
        %v1413 = vshll.u32 %v597, 16
        %v1415 = vrot.slane %v1413, 1
        %v1416 = vsel %vm928, %v1411, %v1415
        %1417 = vrot.lane.b32.xlu0 %v964, 56
        %v1418 = vpop.permute.xlu0 %1417
        %1419 = vrot.lane.b32.xlu0 %v976, 56
        %v1420 = vpop.permute.xlu0 %1419
        %1421 = vrot.lane.b32.xlu0 %v988, 56
        %v1422 = vpop.permute.xlu0 %1421
        %1423 = vrot.lane.b32.xlu0 %v1000, 56
        %v1424 = vpop.permute.xlu0 %1423
        %1425 = vrot.lane.b32.xlu0 %v1012, 56
        %v1426 = vpop.permute.xlu0 %1425
        %1427 = vrot.lane.b32.xlu0 %v1024, 56
        %v1428 = vpop.permute.xlu0 %1427
        %1429 = vrot.lane.b32.xlu0 %v1286, 56
        %v1430 = vpop.permute.xlu0 %1429
        %1431 = vrot.lane.b32.xlu0 %v1416, 56
        %v1432 = vpop.permute.xlu0 %1431
        %v1434 = vshrl.u32 %v869, 16
        %v1436 = vshll.u32 %v869, 16
        %v1438 = vrot.slane %v1436, 1
        %v1439 = vor.u32 %v1434, %v1438
        %v1441 = vshll.u32 %v885, 16
        %v1443 = vrot.slane %v1441, 1
        %v1444 = vsel %vm928, %v1439, %v1443
        %1445 = vrot.lane.b32.xlu0 %v1064, 60
        %v1446 = vpop.permute.xlu0 %1445
        %1447 = vrot.lane.b32.xlu0 %v1076, 60
        %v1448 = vpop.permute.xlu0 %1447
        %1449 = vrot.lane.b32.xlu0 %v1088, 60
        %v1450 = vpop.permute.xlu0 %1449
        %1451 = vrot.lane.b32.xlu0 %v1100, 60
        %v1452 = vpop.permute.xlu0 %1451
        %1453 = vrot.lane.b32.xlu0 %v1112, 60
        %v1454 = vpop.permute.xlu0 %1453
        %1455 = vrot.lane.b32.xlu0 %v1124, 60
        %v1456 = vpop.permute.xlu0 %1455
        %1457 = vrot.lane.b32.xlu0 %v1314, 60
        %v1458 = vpop.permute.xlu0 %1457
        %1459 = vrot.lane.b32.xlu0 %v1444, 60
        %v1460 = vpop.permute.xlu0 %1459
        %vm1461 = vcmask 31744
        %v1463 = vsel %vm1461, %v571, %v913
        %v1465 = vsel %vm1461, %v572, %v915
        %v1467 = vsel %vm1461, %v573, %v917
        %v1469 = vsel %vm1461, %v574, %v919
        %v1471 = vsel %vm1461, %v575, %v921
        %v1473 = vsel %vm1461, %v576, %v923
        %v1475 = vsel %vm1461, %v577, %v925
        %v1477 = vsel %vm1461, %v578, %v927
        %vm1478 = vcmask 64512
        %v1480 = vsel %vm1478, %v1463, %v1026
        %v1482 = vsel %vm1478, %v1465, %v1028
        %v1484 = vsel %vm1478, %v1467, %v1030
        %v1486 = vsel %vm1478, %v1469, %v1032
        %v1488 = vsel %vm1478, %v1471, %v1034
        %v1490 = vsel %vm1478, %v1473, %v1036
        %v1492 = vsel %vm1478, %v1475, %v1038
        %v1494 = vsel %vm1478, %v1477, %v1040
        %vm1495 = vcmask 97280
        %v1497 = vsel %vm1495, %v1480, %v1126
        %v1499 = vsel %vm1495, %v1482, %v1128
        %v1501 = vsel %vm1495, %v1484, %v1130
        %v1503 = vsel %vm1495, %v1486, %v1132
        %v1505 = vsel %vm1495, %v1488, %v1134
        %v1507 = vsel %vm1495, %v1490, %v1136
        %v1509 = vsel %vm1495, %v1492, %v1138
        %v1511 = vsel %vm1495, %v1494, %v1140
        %vm1512 = vcmask 130048
        %v1514 = vsel %vm1512, %v1497, %v1182
        %v1516 = vsel %vm1512, %v1499, %v1184
        %v1518 = vsel %vm1512, %v1501, %v1186
        %v1520 = vsel %vm1512, %v1503, %v1188
        %v1522 = vsel %vm1512, %v1505, %v1190
        %v1524 = vsel %vm1512, %v1507, %v1192
        %v1526 = vsel %vm1512, %v1509, %v1194
        %v1528 = vsel %vm1512, %v1511, %v1196
        %vm1529 = vcmask 162816
        %v1531 = vsel %vm1529, %v1514, %v1226
        %v1533 = vsel %vm1529, %v1516, %v1228
        %v1535 = vsel %vm1529, %v1518, %v1230
        %v1537 = vsel %vm1529, %v1520, %v1232
        %v1539 = vsel %vm1529, %v1522, %v1234
        %v1541 = vsel %vm1529, %v1524, %v1236
        %v1543 = vsel %vm1529, %v1526, %v1238
        %v1545 = vsel %vm1529, %v1528, %v1240
        %vm1546 = vcmask 195584
        %v1548 = vsel %vm1546, %v1531, %v1243
        %v1550 = vsel %vm1546, %v1533, %v1245
        %v1552 = vsel %vm1546, %v1535, %v1247
        %v1554 = vsel %vm1546, %v1537, %v1249
        %v1556 = vsel %vm1546, %v1539, %v1251
        %v1558 = vsel %vm1546, %v1541, %v1253
        %v1560 = vsel %vm1546, %v1543, %v1255
        %v1562 = vsel %vm1546, %v1545, %v1257
        %vm1563 = vcmask 228352
        %v1565 = vsel %vm1563, %v1548, %v1260
        %v1567 = vsel %vm1563, %v1550, %v1262
        %v1569 = vsel %vm1563, %v1552, %v1264
        %v1571 = vsel %vm1563, %v1554, %v1266
        %v1573 = vsel %vm1563, %v1556, %v1268
        %v1575 = vsel %vm1563, %v1558, %v1270
        %v1577 = vsel %vm1563, %v1560, %v1272
        %v1579 = vsel %vm1563, %v1562, %v1274
        %vm1580 = vcmask 261120
        %v1582 = vsel %vm1580, %v1565, %v1288
        %v1584 = vsel %vm1580, %v1567, %v1290
        %v1586 = vsel %vm1580, %v1569, %v1292
        %v1588 = vsel %vm1580, %v1571, %v1294
        %v1590 = vsel %vm1580, %v1573, %v1296
        %v1592 = vsel %vm1580, %v1575, %v1298
        %v1594 = vsel %vm1580, %v1577, %v1300
        %v1596 = vsel %vm1580, %v1579, %v1302
        %vm1597 = vcmask 293888
        %v1599 = vsel %vm1597, %v1582, %v1316
        %v1601 = vsel %vm1597, %v1584, %v1318
        %v1603 = vsel %vm1597, %v1586, %v1320
        %v1605 = vsel %vm1597, %v1588, %v1322
        %v1607 = vsel %vm1597, %v1590, %v1324
        %v1609 = vsel %vm1597, %v1592, %v1326
        %v1611 = vsel %vm1597, %v1594, %v1328
        %v1613 = vsel %vm1597, %v1596, %v1330
        %vm1614 = vcmask 326656
        %v1616 = vsel %vm1614, %v1599, %v1336
        %v1618 = vsel %vm1614, %v1601, %v1338
        %v1620 = vsel %vm1614, %v1603, %v1340
        %v1622 = vsel %vm1614, %v1605, %v1342
        %v1624 = vsel %vm1614, %v1607, %v1344
        %v1626 = vsel %vm1614, %v1609, %v1346
        %v1628 = vsel %vm1614, %v1611, %v1348
        %v1630 = vsel %vm1614, %v1613, %v1350
        %vm1631 = vcmask 359424
        %v1633 = vsel %vm1631, %v1616, %v1356
        %v1635 = vsel %vm1631, %v1618, %v1358
        %v1637 = vsel %vm1631, %v1620, %v1360
        %v1639 = vsel %vm1631, %v1622, %v1362
        %v1641 = vsel %vm1631, %v1624, %v1364
        %v1643 = vsel %vm1631, %v1626, %v1366
        %v1645 = vsel %vm1631, %v1628, %v1368
        %v1647 = vsel %vm1631, %v1630, %v1370
        %vm1648 = vcmask 392192
        %v1650 = vsel %vm1648, %v1633, %v1373
        %v1652 = vsel %vm1648, %v1635, %v1375
        %v1654 = vsel %vm1648, %v1637, %v1377
        %v1656 = vsel %vm1648, %v1639, %v1379
        %v1658 = vsel %vm1648, %v1641, %v1381
        %v1660 = vsel %vm1648, %v1643, %v1383
        %v1662 = vsel %vm1648, %v1645, %v1385
        %v1664 = vsel %vm1648, %v1647, %v1387
        %vm1665 = vcmask 424960
        %v1667 = vsel %vm1665, %v1650, %v1390
        %v1669 = vsel %vm1665, %v1652, %v1392
        %v1671 = vsel %vm1665, %v1654, %v1394
        %v1673 = vsel %vm1665, %v1656, %v1396
        %v1675 = vsel %vm1665, %v1658, %v1398
        %v1677 = vsel %vm1665, %v1660, %v1400
        %v1679 = vsel %vm1665, %v1662, %v1402
        %v1681 = vsel %vm1665, %v1664, %v1404
        %vm1682 = vcmask 457728
        %v1684 = vsel %vm1682, %v1667, %v1418
        %v1686 = vsel %vm1682, %v1669, %v1420
        %v1688 = vsel %vm1682, %v1671, %v1422
        %v1690 = vsel %vm1682, %v1673, %v1424
        %v1692 = vsel %vm1682, %v1675, %v1426
        %v1694 = vsel %vm1682, %v1677, %v1428
        %v1696 = vsel %vm1682, %v1679, %v1430
        %v1698 = vsel %vm1682, %v1681, %v1432
        %vm1699 = vcmask 490496
        %v1701 = vsel %vm1699, %v1684, %v1446
        %v1703 = vsel %vm1699, %v1686, %v1448
        %v1705 = vsel %vm1699, %v1688, %v1450
        %v1707 = vsel %vm1699, %v1690, %v1452
        %v1709 = vsel %vm1699, %v1692, %v1454
        %v1711 = vsel %vm1699, %v1694, %v1456
        %v1713 = vsel %vm1699, %v1696, %v1458
        %v1715 = vsel %vm1699, %v1698, %v1460
        %1717 = vrot.lane.b32.xlu0 %v878, 4
        %v1718 = vpop.permute.xlu0 %1717
        %1719 = vrot.lane.b32.xlu0 %v879, 4
        %v1720 = vpop.permute.xlu0 %1719
        %1721 = vrot.lane.b32.xlu0 %v880, 4
        %v1722 = vpop.permute.xlu0 %1721
        %1723 = vrot.lane.b32.xlu0 %v881, 4
        %v1724 = vpop.permute.xlu0 %1723
        %1725 = vrot.lane.b32.xlu0 %v882, 4
        %v1726 = vpop.permute.xlu0 %1725
        %1727 = vrot.lane.b32.xlu0 %v883, 4
        %v1728 = vpop.permute.xlu0 %1727
        %1729 = vrot.lane.b32.xlu0 %v868, 4
        %v1730 = vpop.permute.xlu0 %1729
        %1731 = vrot.lane.b32.xlu0 %v884, 4
        %v1732 = vpop.permute.xlu0 %1731
        %1733 = vrot.lane.b32.xlu0 %v869, 4
        %v1734 = vpop.permute.xlu0 %1733
        %1735 = vrot.lane.b32.xlu0 %v885, 4
        %v1736 = vpop.permute.xlu0 %1735
        %v1738 = vsel %vm1461, %v590, %v1718
        %v1740 = vsel %vm1461, %v591, %v1720
        %v1742 = vsel %vm1461, %v592, %v1722
        %v1744 = vsel %vm1461, %v593, %v1724
        %v1746 = vsel %vm1461, %v594, %v1726
        %v1748 = vsel %vm1461, %v595, %v1728
        %v1750 = vsel %vm1461, %v579, %v1730
        %v1752 = vsel %vm1461, %v596, %v1732
        %v1754 = vsel %vm1461, %v580, %v1734
        %v1756 = vsel %vm1461, %v597, %v1736
        %v1773 = vrot.slane %v1467, 1
        %v1774 = vrot.slane %v1738, 1
        %v1775 = vsel %vm1156, %v1773, %v1774
        %v1776 = vrot.slane %v1469, 1
        %v1777 = vrot.slane %v1740, 1
        %v1778 = vsel %vm1156, %v1776, %v1777
        %v1779 = vrot.slane %v1471, 1
        %v1780 = vrot.slane %v1742, 1
        %v1781 = vsel %vm1156, %v1779, %v1780
        %v1782 = vrot.slane %v1473, 1
        %v1783 = vrot.slane %v1744, 1
        %v1784 = vsel %vm1156, %v1782, %v1783
        %v1785 = vrot.slane %v1475, 1
        %v1786 = vrot.slane %v1746, 1
        %v1787 = vsel %vm1156, %v1785, %v1786
        %v1788 = vrot.slane %v1477, 1
        %v1789 = vrot.slane %v1748, 1
        %v1790 = vsel %vm1156, %v1788, %v1789
        %v1791 = vrot.slane %v1750, 1
        %v1792 = vrot.slane %v1752, 1
        %v1793 = vsel %vm1156, %v1791, %v1792
        %v1794 = vrot.slane %v1754, 1
        %v1795 = vrot.slane %v1756, 1
        %v1796 = vsel %vm1156, %v1794, %v1795
        %1797 = vrot.lane.b32.xlu0 %v1775, 64
        %v1798 = vpop.permute.xlu0 %1797
        %1799 = vrot.lane.b32.xlu0 %v1778, 64
        %v1800 = vpop.permute.xlu0 %1799
        %1801 = vrot.lane.b32.xlu0 %v1781, 64
        %v1802 = vpop.permute.xlu0 %1801
        %1803 = vrot.lane.b32.xlu0 %v1784, 64
        %v1804 = vpop.permute.xlu0 %1803
        %1805 = vrot.lane.b32.xlu0 %v1787, 64
        %v1806 = vpop.permute.xlu0 %1805
        %1807 = vrot.lane.b32.xlu0 %v1790, 64
        %v1808 = vpop.permute.xlu0 %1807
        %1809 = vrot.lane.b32.xlu0 %v1793, 64
        %v1810 = vpop.permute.xlu0 %1809
        %1811 = vrot.lane.b32.xlu0 %v1796, 64
        %v1812 = vpop.permute.xlu0 %1811
        %vm1813 = vcmask 523264
        %v1815 = vsel %vm1813, %v1701, %v1798
        %v1817 = vsel %vm1813, %v1703, %v1800
        %v1819 = vsel %vm1813, %v1705, %v1802
        %v1821 = vsel %vm1813, %v1707, %v1804
        %v1823 = vsel %vm1813, %v1709, %v1806
        %v1825 = vsel %vm1813, %v1711, %v1808
        %v1827 = vsel %vm1813, %v1713, %v1810
        %v1829 = vsel %vm1813, %v1715, %v1812
        %v1839 = vunpack.c.l.b16 %v893
        %v1840 = vunpack.c.l.b16 %v894
        %v1841 = vunpack.c.l.b16 %v895
        %v1842 = vunpack.c.l.b16 %v896
        %v1843 = vunpack.c.l.b16 %v897
        %v1844 = vunpack.c.l.b16 %v898
        %v1845 = vunpack.c.l.b16 %v899
        %v1846 = vunpack.c.l.b16 %v900
        %v1847 = vunpack.c.l.b16 %v901
        %v1848 = vpack.c.b16 %v1840, %v1839
        %v1849 = vpack.c.b16 %v1842, %v1841
        %v1850 = vpack.c.b16 %v1844, %v1843
        %v1851 = vpack.c.b16 %v1846, %v1845
        %v1852 = vpack.c.b16 %v1847, %v1847
        %vm1857 = vcmask 588800
        %v1858 = vsel %vm1857, %v1815, 0
        %v1860 = vsel %vm1857, %v1817, 0
        %v1862 = vsel %vm1857, %v1819, 0
        %v1864 = vsel %vm1857, %v1821, 0
        %v1866 = vsel %vm1857, %v1823, 0
        %v1868 = vsel %vm1857, %v1825, 0
        %v1870 = vsel %vm1857, %v1827, 0
        %v1872 = vsel %vm1857, %v1829, 0
        %vm1874 = vcmask 1043456
        %v1876 = vsel %vm1874, %v1852, 0
        %1878 = vmatpush.bf16.msra.mxu0 0
        %1879 = vmatpush.bf16.msra.mxu0 0
        %1880 = vmatpush.bf16.msra.mxu0 0
        %1881 = vmatpush.bf16.msra.mxu0 %v1876
        %1882 = vmatpush.bf16.msra.mxu0 %v1851
        %1883 = vmatpush.bf16.msra.mxu0 %v1850
        %1884 = vmatpush.bf16.msra.mxu0 %v1849
        %1885 = vmatpush.bf16.msra.mxu0 %v1848
        %1886 = vmatmul.bf16.gmra.mxu0 %v1858
        %v1887 = vpop.f32.mrf.mxu0
        %v1888 = vadd.f32 0.0, %v1887
        %v1889 = vpop.f32.mrf.mxu0
        %v1890 = vadd.f32 0.0, %v1889
        %1891 = vmatmul.bf16.gmra.mxu0 %v1860
        %v1892 = vpop.f32.mrf.mxu0
        %v1893 = vadd.f32 0.0, %v1892
        %v1894 = vpop.f32.mrf.mxu0
        %v1895 = vadd.f32 0.0, %v1894
        %1896 = vmatmul.bf16.gmra.mxu0 %v1862
        %v1897 = vpop.f32.mrf.mxu0
        %v1898 = vadd.f32 0.0, %v1897
        %v1899 = vpop.f32.mrf.mxu0
        %v1900 = vadd.f32 0.0, %v1899
        %1901 = vmatmul.bf16.gmra.mxu0 %v1864
        %v1902 = vpop.f32.mrf.mxu0
        %v1903 = vadd.f32 0.0, %v1902
        %v1904 = vpop.f32.mrf.mxu0
        %v1905 = vadd.f32 0.0, %v1904
        %1906 = vmatmul.bf16.gmra.mxu0 %v1866
        %v1907 = vpop.f32.mrf.mxu0
        %v1908 = vadd.f32 0.0, %v1907
        %v1909 = vpop.f32.mrf.mxu0
        %v1910 = vadd.f32 0.0, %v1909
        %1911 = vmatmul.bf16.gmra.mxu0 %v1868
        %v1912 = vpop.f32.mrf.mxu0
        %v1913 = vadd.f32 0.0, %v1912
        %v1914 = vpop.f32.mrf.mxu0
        %v1915 = vadd.f32 0.0, %v1914
        %1916 = vmatmul.bf16.gmra.mxu0 %v1870
        %v1917 = vpop.f32.mrf.mxu0
        %v1918 = vadd.f32 0.0, %v1917
        %v1919 = vpop.f32.mrf.mxu0
        %v1920 = vadd.f32 0.0, %v1919
        %1921 = vmatmul.bf16.gmra.mxu0 %v1872
        %v1922 = vpop.f32.mrf.mxu0
        %v1923 = vadd.f32 0.0, %v1922
        %v1924 = vpop.f32.mrf.mxu0
        %v1925 = vadd.f32 0.0, %v1924
        %1926 = vdwg.mxu0
        %v1928 = vperm.slane %v902, 0
        %v1930 = vmul.f32 %v1888, %v1928
        %v1931 = vmul.f32 %v1890, %v1928
        %v1932 = vmul.f32 %v1893, %v1928
        %v1933 = vmul.f32 %v1895, %v1928
        %v1934 = vmul.f32 %v1898, %v1928
        %v1935 = vmul.f32 %v1900, %v1928
        %v1936 = vmul.f32 %v1903, %v1928
        %v1937 = vmul.f32 %v1905, %v1928
        %v1938 = vmul.f32 %v1908, %v1928
        %v1939 = vmul.f32 %v1910, %v1928
        %v1940 = vmul.f32 %v1913, %v1928
        %v1941 = vmul.f32 %v1915, %v1928
        %v1942 = vmul.f32 %v1918, %v1928
        %v1943 = vmul.f32 %v1920, %v1928
        %v1944 = vmul.f32 %v1923, %v1928
        %v1945 = vmul.f32 %v1925, %v1928
        %v1947 = vperm.slane %v903, 0
        %v1949 = vadd.f32 %v1930, %v1947
        %v1950 = vadd.f32 %v1931, %v1947
        %v1951 = vadd.f32 %v1932, %v1947
        %v1952 = vadd.f32 %v1933, %v1947
        %v1953 = vadd.f32 %v1934, %v1947
        %v1954 = vadd.f32 %v1935, %v1947
        %v1955 = vadd.f32 %v1936, %v1947
        %v1956 = vadd.f32 %v1937, %v1947
        %v1957 = vadd.f32 %v1938, %v1947
        %v1958 = vadd.f32 %v1939, %v1947
        %v1959 = vadd.f32 %v1940, %v1947
        %v1960 = vadd.f32 %v1941, %v1947
        %v1961 = vadd.f32 %v1942, %v1947
        %v1962 = vadd.f32 %v1943, %v1947
        %v1963 = vadd.f32 %v1944, %v1947
        %v1964 = vadd.f32 %v1945, %v1947
        %v1965 = vmax.f32 %v1949, 0.0
        %v1966 = vmax.f32 %v1950, 0.0
        %v1967 = vmax.f32 %v1951, 0.0
        %v1968 = vmax.f32 %v1952, 0.0
        %v1969 = vmax.f32 %v1953, 0.0
        %v1970 = vmax.f32 %v1954, 0.0
        %v1971 = vmax.f32 %v1955, 0.0
        %v1972 = vmax.f32 %v1956, 0.0
        %v1973 = vmax.f32 %v1957, 0.0
        %v1974 = vmax.f32 %v1958, 0.0
        %v1975 = vmax.f32 %v1959, 0.0
        %v1976 = vmax.f32 %v1960, 0.0
        %v1977 = vmax.f32 %v1961, 0.0
        %v1978 = vmax.f32 %v1962, 0.0
        %v1979 = vmax.f32 %v1963, 0.0
        %v1980 = vmax.f32 %v1964, 0.0
        %v1981 = vpack.c.bf16 %v1965, %v1965
        %v1982 = vpack.c.bf16 %v1966, %v1966
        %v1983 = vpack.c.bf16 %v1967, %v1967
        %v1984 = vpack.c.bf16 %v1968, %v1968
        %v1985 = vpack.c.bf16 %v1969, %v1969
        %v1986 = vpack.c.bf16 %v1970, %v1970
        %v1987 = vpack.c.bf16 %v1971, %v1971
        %v1988 = vpack.c.bf16 %v1972, %v1972
        %v1989 = vpack.c.bf16 %v1973, %v1973
        %v1990 = vpack.c.bf16 %v1974, %v1974
        %v1991 = vpack.c.bf16 %v1975, %v1975
        %v1992 = vpack.c.bf16 %v1976, %v1976
        %v1993 = vpack.c.bf16 %v1977, %v1977
        %v1994 = vpack.c.bf16 %v1978, %v1978
        %v1995 = vpack.c.bf16 %v1979, %v1979
        %v1996 = vpack.c.bf16 %v1980, %v1980
        %1997 = vst [vmem:[%s281] sm:$0xf] %v1981
        %1998 = vst [vmem:[%s281 + $0x4] sm:$0xf] %v1982
        %1999 = vst [vmem:[%s281 + $0x8] sm:$0xf] %v1983
        %2000 = vst [vmem:[%s281 + $0xc] sm:$0xf] %v1984
        %2001 = vst [vmem:[%s281 + $0x10] sm:$0xf] %v1985
        %2002 = vst [vmem:[%s281 + $0x14] sm:$0xf] %v1986
        %2003 = vst [vmem:[%s281 + $0x18] sm:$0xf] %v1987
        %2004 = vst [vmem:[%s281 + $0x1c] sm:$0xf] %v1988
        %2005 = vst [vmem:[%s281 + $0x20] sm:$0xf] %v1989
        %2006 = vst [vmem:[%s281 + $0x24] sm:$0xf] %v1990
        %2007 = vst [vmem:[%s281 + $0x28] sm:$0xf] %v1991
        %2008 = vst [vmem:[%s281 + $0x2c] sm:$0xf] %v1992
        %2009 = vst [vmem:[%s281 + $0x30] sm:$0xf] %v1993
        %2010 = vst [vmem:[%s281 + $0x34] sm:$0xf] %v1994
        %2011 = vst [vmem:[%s281 + $0x38] sm:$0xf] %v1995
        %2012 = vst [vmem:[%s281 + $0x3c] sm:$0xf] %v1996
        %2019 = vrot.lane.b32.xlu0 %v870, 4
        %v2020 = vpop.permute.xlu0 %2019
        %2021 = vrot.lane.b32.xlu0 %v871, 4
        %v2022 = vpop.permute.xlu0 %2021
        %2023 = vrot.lane.b32.xlu0 %v872, 4
        %v2024 = vpop.permute.xlu0 %2023
        %2025 = vrot.lane.b32.xlu0 %v873, 4
        %v2026 = vpop.permute.xlu0 %2025
        %2027 = vrot.lane.b32.xlu0 %v874, 4
        %v2028 = vpop.permute.xlu0 %2027
        %2029 = vrot.lane.b32.xlu0 %v875, 4
        %v2030 = vpop.permute.xlu0 %2029
        %v2032 = vshrl.u32 %v581, 16
        %v2034 = vshll.u32 %v581, 16
        %v2036 = vrot.slane %v2034, 1
        %v2037 = vor.u32 %v2032, %v2036
        %v2039 = vshll.u32 %v598, 16
        %v2041 = vrot.slane %v2039, 1
        %v2042 = vsel %vm928, %v2037, %v2041
        %v2044 = vshrl.u32 %v582, 16
        %v2046 = vshll.u32 %v582, 16
        %v2048 = vrot.slane %v2046, 1
        %v2049 = vor.u32 %v2044, %v2048
        %v2051 = vshll.u32 %v599, 16
        %v2053 = vrot.slane %v2051, 1
        %v2054 = vsel %vm928, %v2049, %v2053
        %v2056 = vshrl.u32 %v583, 16
        %v2058 = vshll.u32 %v583, 16
        %v2060 = vrot.slane %v2058, 1
        %v2061 = vor.u32 %v2056, %v2060
        %v2063 = vshll.u32 %v600, 16
        %v2065 = vrot.slane %v2063, 1
        %v2066 = vsel %vm928, %v2061, %v2065
        %v2068 = vshrl.u32 %v584, 16
        %v2070 = vshll.u32 %v584, 16
        %v2072 = vrot.slane %v2070, 1
        %v2073 = vor.u32 %v2068, %v2072
        %v2075 = vshll.u32 %v601, 16
        %v2077 = vrot.slane %v2075, 1
        %v2078 = vsel %vm928, %v2073, %v2077
        %v2080 = vshrl.u32 %v585, 16
        %v2082 = vshll.u32 %v585, 16
        %v2084 = vrot.slane %v2082, 1
        %v2085 = vor.u32 %v2080, %v2084
        %v2087 = vshll.u32 %v602, 16
        %v2089 = vrot.slane %v2087, 1
        %v2090 = vsel %vm928, %v2085, %v2089
        %v2092 = vshrl.u32 %v586, 16
        %v2094 = vshll.u32 %v586, 16
        %v2096 = vrot.slane %v2094, 1
        %v2097 = vor.u32 %v2092, %v2096
        %v2099 = vshll.u32 %v603, 16
        %v2101 = vrot.slane %v2099, 1
        %v2102 = vsel %vm928, %v2097, %v2101
        %2103 = vrot.lane.b32.xlu0 %v1286, 8
        %v2104 = vpop.permute.xlu0 %2103
        %2105 = vrot.lane.b32.xlu0 %v1416, 8
        %v2106 = vpop.permute.xlu0 %2105
        %2107 = vrot.lane.b32.xlu0 %v2042, 8
        %v2108 = vpop.permute.xlu0 %2107
        %2109 = vrot.lane.b32.xlu0 %v2054, 8
        %v2110 = vpop.permute.xlu0 %2109
        %2111 = vrot.lane.b32.xlu0 %v2066, 8
        %v2112 = vpop.permute.xlu0 %2111
        %2113 = vrot.lane.b32.xlu0 %v2078, 8
        %v2114 = vpop.permute.xlu0 %2113
        %2115 = vrot.lane.b32.xlu0 %v2090, 8
        %v2116 = vpop.permute.xlu0 %2115
        %2117 = vrot.lane.b32.xlu0 %v2102, 8
        %v2118 = vpop.permute.xlu0 %2117
        %v2120 = vshrl.u32 %v870, 16
        %v2122 = vshll.u32 %v870, 16
        %v2124 = vrot.slane %v2122, 1
        %v2125 = vor.u32 %v2120, %v2124
        %v2127 = vshll.u32 %v886, 16
        %v2129 = vrot.slane %v2127, 1
        %v2130 = vsel %vm928, %v2125, %v2129
        %v2132 = vshrl.u32 %v871, 16
        %v2134 = vshll.u32 %v871, 16
        %v2136 = vrot.slane %v2134, 1
        %v2137 = vor.u32 %v2132, %v2136
        %v2139 = vshll.u32 %v887, 16
        %v2141 = vrot.slane %v2139, 1
        %v2142 = vsel %vm928, %v2137, %v2141
        %v2144 = vshrl.u32 %v872, 16
        %v2146 = vshll.u32 %v872, 16
        %v2148 = vrot.slane %v2146, 1
        %v2149 = vor.u32 %v2144, %v2148
        %v2151 = vshll.u32 %v888, 16
        %v2153 = vrot.slane %v2151, 1
        %v2154 = vsel %vm928, %v2149, %v2153
        %v2156 = vshrl.u32 %v873, 16
        %v2158 = vshll.u32 %v873, 16
        %v2160 = vrot.slane %v2158, 1
        %v2161 = vor.u32 %v2156, %v2160
        %v2163 = vshll.u32 %v889, 16
        %v2165 = vrot.slane %v2163, 1
        %v2166 = vsel %vm928, %v2161, %v2165
        %v2168 = vshrl.u32 %v874, 16
        %v2170 = vshll.u32 %v874, 16
        %v2172 = vrot.slane %v2170, 1
        %v2173 = vor.u32 %v2168, %v2172
        %v2175 = vshll.u32 %v890, 16
        %v2177 = vrot.slane %v2175, 1
        %v2178 = vsel %vm928, %v2173, %v2177
        %v2180 = vshrl.u32 %v875, 16
        %v2182 = vshll.u32 %v875, 16
        %v2184 = vrot.slane %v2182, 1
        %v2185 = vor.u32 %v2180, %v2184
        %v2187 = vshll.u32 %v891, 16
        %v2189 = vrot.slane %v2187, 1
        %v2190 = vsel %vm928, %v2185, %v2189
        %2191 = vrot.lane.b32.xlu0 %v1314, 12
        %v2192 = vpop.permute.xlu0 %2191
        %2193 = vrot.lane.b32.xlu0 %v1444, 12
        %v2194 = vpop.permute.xlu0 %2193
        %2195 = vrot.lane.b32.xlu0 %v2130, 12
        %v2196 = vpop.permute.xlu0 %2195
        %2197 = vrot.lane.b32.xlu0 %v2142, 12
        %v2198 = vpop.permute.xlu0 %2197
        %2199 = vrot.lane.b32.xlu0 %v2154, 12
        %v2200 = vpop.permute.xlu0 %2199
        %2201 = vrot.lane.b32.xlu0 %v2166, 12
        %v2202 = vpop.permute.xlu0 %2201
        %2203 = vrot.lane.b32.xlu0 %v2178, 12
        %v2204 = vpop.permute.xlu0 %2203
        %2205 = vrot.lane.b32.xlu0 %v2190, 12
        %v2206 = vpop.permute.xlu0 %2205
        %v2220 = vrot.slane %v580, 1
        %v2221 = vrot.slane %v597, 1
        %v2222 = vsel %vm1156, %v2220, %v2221
        %v2223 = vrot.slane %v581, 1
        %v2224 = vrot.slane %v598, 1
        %v2225 = vsel %vm1156, %v2223, %v2224
        %v2226 = vrot.slane %v582, 1
        %v2227 = vrot.slane %v599, 1
        %v2228 = vsel %vm1156, %v2226, %v2227
        %v2229 = vrot.slane %v583, 1
        %v2230 = vrot.slane %v600, 1
        %v2231 = vsel %vm1156, %v2229, %v2230
        %v2232 = vrot.slane %v584, 1
        %v2233 = vrot.slane %v601, 1
        %v2234 = vsel %vm1156, %v2232, %v2233
        %v2235 = vrot.slane %v585, 1
        %v2236 = vrot.slane %v602, 1
        %v2237 = vsel %vm1156, %v2235, %v2236
        %v2238 = vrot.slane %v586, 1
        %v2239 = vrot.slane %v603, 1
        %v2240 = vsel %vm1156, %v2238, %v2239
        %2241 = vrot.lane.b32.xlu0 %v1334, 16
        %v2242 = vpop.permute.xlu0 %2241
        %2243 = vrot.lane.b32.xlu0 %v2222, 16
        %v2244 = vpop.permute.xlu0 %2243
        %2245 = vrot.lane.b32.xlu0 %v2225, 16
        %v2246 = vpop.permute.xlu0 %2245
        %2247 = vrot.lane.b32.xlu0 %v2228, 16
        %v2248 = vpop.permute.xlu0 %2247
        %2249 = vrot.lane.b32.xlu0 %v2231, 16
        %v2250 = vpop.permute.xlu0 %2249
        %2251 = vrot.lane.b32.xlu0 %v2234, 16
        %v2252 = vpop.permute.xlu0 %2251
        %2253 = vrot.lane.b32.xlu0 %v2237, 16
        %v2254 = vpop.permute.xlu0 %2253
        %2255 = vrot.lane.b32.xlu0 %v2240, 16
        %v2256 = vpop.permute.xlu0 %2255
        %v2263 = vrot.slane %v869, 1
        %v2264 = vrot.slane %v885, 1
        %v2265 = vsel %vm1156, %v2263, %v2264
        %v2266 = vrot.slane %v870, 1
        %v2267 = vrot.slane %v886, 1
        %v2268 = vsel %vm1156, %v2266, %v2267
        %v2269 = vrot.slane %v871, 1
        %v2270 = vrot.slane %v887, 1
        %v2271 = vsel %vm1156, %v2269, %v2270
        %v2272 = vrot.slane %v872, 1
        %v2273 = vrot.slane %v888, 1
        %v2274 = vsel %vm1156, %v2272, %v2273
        %v2275 = vrot.slane %v873, 1
        %v2276 = vrot.slane %v889, 1
        %v2277 = vsel %vm1156, %v2275, %v2276
        %v2278 = vrot.slane %v874, 1
        %v2279 = vrot.slane %v890, 1
        %v2280 = vsel %vm1156, %v2278, %v2279
        %v2281 = vrot.slane %v875, 1
        %v2282 = vrot.slane %v891, 1
        %v2283 = vsel %vm1156, %v2281, %v2282
        %2284 = vrot.lane.b32.xlu0 %v1354, 20
        %v2285 = vpop.permute.xlu0 %2284
        %2286 = vrot.lane.b32.xlu0 %v2265, 20
        %v2287 = vpop.permute.xlu0 %2286
        %2288 = vrot.lane.b32.xlu0 %v2268, 20
        %v2289 = vpop.permute.xlu0 %2288
        %2290 = vrot.lane.b32.xlu0 %v2271, 20
        %v2291 = vpop.permute.xlu0 %2290
        %2292 = vrot.lane.b32.xlu0 %v2274, 20
        %v2293 = vpop.permute.xlu0 %2292
        %2294 = vrot.lane.b32.xlu0 %v2277, 20
        %v2295 = vpop.permute.xlu0 %2294
        %2296 = vrot.lane.b32.xlu0 %v2280, 20
        %v2297 = vpop.permute.xlu0 %2296
        %2298 = vrot.lane.b32.xlu0 %v2283, 20
        %v2299 = vpop.permute.xlu0 %2298
        %2301 = vrot.lane.b32.xlu0 %v580, 24
        %v2302 = vpop.permute.xlu0 %2301
        %2303 = vrot.lane.b32.xlu0 %v581, 24
        %v2304 = vpop.permute.xlu0 %2303
        %2305 = vrot.lane.b32.xlu0 %v582, 24
        %v2306 = vpop.permute.xlu0 %2305
        %2307 = vrot.lane.b32.xlu0 %v583, 24
        %v2308 = vpop.permute.xlu0 %2307
        %2309 = vrot.lane.b32.xlu0 %v584, 24
        %v2310 = vpop.permute.xlu0 %2309
        %2311 = vrot.lane.b32.xlu0 %v585, 24
        %v2312 = vpop.permute.xlu0 %2311
        %2313 = vrot.lane.b32.xlu0 %v586, 24
        %v2314 = vpop.permute.xlu0 %2313
        %2315 = vrot.lane.b32.xlu0 %v587, 24
        %v2316 = vpop.permute.xlu0 %2315
        %2318 = vrot.lane.b32.xlu0 %v869, 28
        %v2319 = vpop.permute.xlu0 %2318
        %2320 = vrot.lane.b32.xlu0 %v870, 28
        %v2321 = vpop.permute.xlu0 %2320
        %2322 = vrot.lane.b32.xlu0 %v871, 28
        %v2323 = vpop.permute.xlu0 %2322
        %2324 = vrot.lane.b32.xlu0 %v872, 28
        %v2325 = vpop.permute.xlu0 %2324
        %2326 = vrot.lane.b32.xlu0 %v873, 28
        %v2327 = vpop.permute.xlu0 %2326
        %2328 = vrot.lane.b32.xlu0 %v874, 28
        %v2329 = vpop.permute.xlu0 %2328
        %2330 = vrot.lane.b32.xlu0 %v875, 28
        %v2331 = vpop.permute.xlu0 %2330
        %2332 = vrot.lane.b32.xlu0 %v876, 28
        %v2333 = vpop.permute.xlu0 %2332
        %v2335 = vshrl.u32 %v587, 16
        %v2337 = vshll.u32 %v587, 16
        %v2339 = vrot.slane %v2337, 1
        %v2340 = vor.u32 %v2335, %v2339
        %v2342 = vshll.u32 %v604, 16
        %v2344 = vrot.slane %v2342, 1
        %v2345 = vsel %vm928, %v2340, %v2344
        %2346 = vrot.lane.b32.xlu0 %v1416, 32
        %v2347 = vpop.permute.xlu0 %2346
        %2348 = vrot.lane.b32.xlu0 %v2042, 32
        %v2349 = vpop.permute.xlu0 %2348
        %2350 = vrot.lane.b32.xlu0 %v2054, 32
        %v2351 = vpop.permute.xlu0 %2350
        %2352 = vrot.lane.b32.xlu0 %v2066, 32
        %v2353 = vpop.permute.xlu0 %2352
        %2354 = vrot.lane.b32.xlu0 %v2078, 32
        %v2355 = vpop.permute.xlu0 %2354
        %2356 = vrot.lane.b32.xlu0 %v2090, 32
        %v2357 = vpop.permute.xlu0 %2356
        %2358 = vrot.lane.b32.xlu0 %v2102, 32
        %v2359 = vpop.permute.xlu0 %2358
        %2360 = vrot.lane.b32.xlu0 %v2345, 32
        %v2361 = vpop.permute.xlu0 %2360
        %v2363 = vshrl.u32 %v876, 16
        %v2365 = vshll.u32 %v876, 16
        %v2367 = vrot.slane %v2365, 1
        %v2368 = vor.u32 %v2363, %v2367
        %v2370 = vshll.u32 %v892, 16
        %v2372 = vrot.slane %v2370, 1
        %v2373 = vsel %vm928, %v2368, %v2372
        %2374 = vrot.lane.b32.xlu0 %v1444, 36
        %v2375 = vpop.permute.xlu0 %2374
        %2376 = vrot.lane.b32.xlu0 %v2130, 36
        %v2377 = vpop.permute.xlu0 %2376
        %2378 = vrot.lane.b32.xlu0 %v2142, 36
        %v2379 = vpop.permute.xlu0 %2378
        %2380 = vrot.lane.b32.xlu0 %v2154, 36
        %v2381 = vpop.permute.xlu0 %2380
        %2382 = vrot.lane.b32.xlu0 %v2166, 36
        %v2383 = vpop.permute.xlu0 %2382
        %2384 = vrot.lane.b32.xlu0 %v2178, 36
        %v2385 = vpop.permute.xlu0 %2384
        %2386 = vrot.lane.b32.xlu0 %v2190, 36
        %v2387 = vpop.permute.xlu0 %2386
        %2388 = vrot.lane.b32.xlu0 %v2373, 36
        %v2389 = vpop.permute.xlu0 %2388
        %v2391 = vrot.slane %v587, 1
        %v2392 = vrot.slane %v604, 1
        %v2393 = vsel %vm1156, %v2391, %v2392
        %2394 = vrot.lane.b32.xlu0 %v2222, 40
        %v2395 = vpop.permute.xlu0 %2394
        %2396 = vrot.lane.b32.xlu0 %v2225, 40
        %v2397 = vpop.permute.xlu0 %2396
        %2398 = vrot.lane.b32.xlu0 %v2228, 40
        %v2399 = vpop.permute.xlu0 %2398
        %2400 = vrot.lane.b32.xlu0 %v2231, 40
        %v2401 = vpop.permute.xlu0 %2400
        %2402 = vrot.lane.b32.xlu0 %v2234, 40
        %v2403 = vpop.permute.xlu0 %2402
        %2404 = vrot.lane.b32.xlu0 %v2237, 40
        %v2405 = vpop.permute.xlu0 %2404
        %2406 = vrot.lane.b32.xlu0 %v2240, 40
        %v2407 = vpop.permute.xlu0 %2406
        %2408 = vrot.lane.b32.xlu0 %v2393, 40
        %v2409 = vpop.permute.xlu0 %2408
        %v2411 = vrot.slane %v876, 1
        %v2412 = vrot.slane %v892, 1
        %v2413 = vsel %vm1156, %v2411, %v2412
        %2414 = vrot.lane.b32.xlu0 %v2265, 44
        %v2415 = vpop.permute.xlu0 %2414
        %2416 = vrot.lane.b32.xlu0 %v2268, 44
        %v2417 = vpop.permute.xlu0 %2416
        %2418 = vrot.lane.b32.xlu0 %v2271, 44
        %v2419 = vpop.permute.xlu0 %2418
        %2420 = vrot.lane.b32.xlu0 %v2274, 44
        %v2421 = vpop.permute.xlu0 %2420
        %2422 = vrot.lane.b32.xlu0 %v2277, 44
        %v2423 = vpop.permute.xlu0 %2422
        %2424 = vrot.lane.b32.xlu0 %v2280, 44
        %v2425 = vpop.permute.xlu0 %2424
        %2426 = vrot.lane.b32.xlu0 %v2283, 44
        %v2427 = vpop.permute.xlu0 %2426
        %2428 = vrot.lane.b32.xlu0 %v2413, 44
        %v2429 = vpop.permute.xlu0 %2428
        %2430 = vrot.lane.b32.xlu0 %v581, 48
        %v2431 = vpop.permute.xlu0 %2430
        %2432 = vrot.lane.b32.xlu0 %v582, 48
        %v2433 = vpop.permute.xlu0 %2432
        %2434 = vrot.lane.b32.xlu0 %v583, 48
        %v2435 = vpop.permute.xlu0 %2434
        %2436 = vrot.lane.b32.xlu0 %v584, 48
        %v2437 = vpop.permute.xlu0 %2436
        %2438 = vrot.lane.b32.xlu0 %v585, 48
        %v2439 = vpop.permute.xlu0 %2438
        %2440 = vrot.lane.b32.xlu0 %v586, 48
        %v2441 = vpop.permute.xlu0 %2440
        %2442 = vrot.lane.b32.xlu0 %v587, 48
        %v2443 = vpop.permute.xlu0 %2442
        %2444 = vrot.lane.b32.xlu0 %v571, 48
        %v2445 = vpop.permute.xlu0 %2444
        %2446 = vrot.lane.b32.xlu0 %v870, 52
        %v2447 = vpop.permute.xlu0 %2446
        %2448 = vrot.lane.b32.xlu0 %v871, 52
        %v2449 = vpop.permute.xlu0 %2448
        %2450 = vrot.lane.b32.xlu0 %v872, 52
        %v2451 = vpop.permute.xlu0 %2450
        %2452 = vrot.lane.b32.xlu0 %v873, 52
        %v2453 = vpop.permute.xlu0 %2452
        %2454 = vrot.lane.b32.xlu0 %v874, 52
        %v2455 = vpop.permute.xlu0 %2454
        %2456 = vrot.lane.b32.xlu0 %v875, 52
        %v2457 = vpop.permute.xlu0 %2456
        %2458 = vrot.lane.b32.xlu0 %v876, 52
        %v2459 = vpop.permute.xlu0 %2458
        %2460 = vrot.lane.b32.xlu0 %v571, 52
        %v2461 = vpop.permute.xlu0 %2460
        %2462 = vrot.lane.b32.xlu0 %v2042, 56
        %v2463 = vpop.permute.xlu0 %2462
        %2464 = vrot.lane.b32.xlu0 %v2054, 56
        %v2465 = vpop.permute.xlu0 %2464
        %2466 = vrot.lane.b32.xlu0 %v2066, 56
        %v2467 = vpop.permute.xlu0 %2466
        %2468 = vrot.lane.b32.xlu0 %v2078, 56
        %v2469 = vpop.permute.xlu0 %2468
        %2470 = vrot.lane.b32.xlu0 %v2090, 56
        %v2471 = vpop.permute.xlu0 %2470
        %2472 = vrot.lane.b32.xlu0 %v2102, 56
        %v2473 = vpop.permute.xlu0 %2472
        %2474 = vrot.lane.b32.xlu0 %v2345, 56
        %v2475 = vpop.permute.xlu0 %2474
        %2476 = vrot.lane.b32.xlu0 %v940, 56
        %v2477 = vpop.permute.xlu0 %2476
        %2478 = vrot.lane.b32.xlu0 %v2130, 60
        %v2479 = vpop.permute.xlu0 %2478
        %2480 = vrot.lane.b32.xlu0 %v2142, 60
        %v2481 = vpop.permute.xlu0 %2480
        %2482 = vrot.lane.b32.xlu0 %v2154, 60
        %v2483 = vpop.permute.xlu0 %2482
        %2484 = vrot.lane.b32.xlu0 %v2166, 60
        %v2485 = vpop.permute.xlu0 %2484
        %2486 = vrot.lane.b32.xlu0 %v2178, 60
        %v2487 = vpop.permute.xlu0 %2486
        %2488 = vrot.lane.b32.xlu0 %v2190, 60
        %v2489 = vpop.permute.xlu0 %2488
        %2490 = vrot.lane.b32.xlu0 %v2373, 60
        %v2491 = vpop.permute.xlu0 %2490
        %2492 = vrot.lane.b32.xlu0 %v940, 60
        %v2493 = vpop.permute.xlu0 %2492
        %v2495 = vsel %vm1461, %v581, %v2020
        %v2497 = vsel %vm1461, %v582, %v2022
        %v2499 = vsel %vm1461, %v583, %v2024
        %v2501 = vsel %vm1461, %v584, %v2026
        %v2503 = vsel %vm1461, %v585, %v2028
        %v2505 = vsel %vm1461, %v586, %v2030
        %v2507 = vsel %vm1478, %v1750, %v2104
        %v2509 = vsel %vm1478, %v1754, %v2106
        %v2511 = vsel %vm1478, %v2495, %v2108
        %v2513 = vsel %vm1478, %v2497, %v2110
        %v2515 = vsel %vm1478, %v2499, %v2112
        %v2517 = vsel %vm1478, %v2501, %v2114
        %v2519 = vsel %vm1478, %v2503, %v2116
        %v2521 = vsel %vm1478, %v2505, %v2118
        %v2523 = vsel %vm1495, %v2507, %v2192
        %v2525 = vsel %vm1495, %v2509, %v2194
        %v2527 = vsel %vm1495, %v2511, %v2196
        %v2529 = vsel %vm1495, %v2513, %v2198
        %v2531 = vsel %vm1495, %v2515, %v2200
        %v2533 = vsel %vm1495, %v2517, %v2202
        %v2535 = vsel %vm1495, %v2519, %v2204
        %v2537 = vsel %vm1495, %v2521, %v2206
        %v2539 = vsel %vm1512, %v2523, %v2242
        %v2541 = vsel %vm1512, %v2525, %v2244
        %v2543 = vsel %vm1512, %v2527, %v2246
        %v2545 = vsel %vm1512, %v2529, %v2248
        %v2547 = vsel %vm1512, %v2531, %v2250
        %v2549 = vsel %vm1512, %v2533, %v2252
        %v2551 = vsel %vm1512, %v2535, %v2254
        %v2553 = vsel %vm1512, %v2537, %v2256
        %v2555 = vsel %vm1529, %v2539, %v2285
        %v2557 = vsel %vm1529, %v2541, %v2287
        %v2559 = vsel %vm1529, %v2543, %v2289
        %v2561 = vsel %vm1529, %v2545, %v2291
        %v2563 = vsel %vm1529, %v2547, %v2293
        %v2565 = vsel %vm1529, %v2549, %v2295
        %v2567 = vsel %vm1529, %v2551, %v2297
        %v2569 = vsel %vm1529, %v2553, %v2299
        %v2571 = vsel %vm1546, %v2555, %v2302
        %v2573 = vsel %vm1546, %v2557, %v2304
        %v2575 = vsel %vm1546, %v2559, %v2306
        %v2577 = vsel %vm1546, %v2561, %v2308
        %v2579 = vsel %vm1546, %v2563, %v2310
        %v2581 = vsel %vm1546, %v2565, %v2312
        %v2583 = vsel %vm1546, %v2567, %v2314
        %v2585 = vsel %vm1546, %v2569, %v2316
        %v2587 = vsel %vm1563, %v2571, %v2319
        %v2589 = vsel %vm1563, %v2573, %v2321
        %v2591 = vsel %vm1563, %v2575, %v2323
        %v2593 = vsel %vm1563, %v2577, %v2325
        %v2595 = vsel %vm1563, %v2579, %v2327
        %v2597 = vsel %vm1563, %v2581, %v2329
        %v2599 = vsel %vm1563, %v2583, %v2331
        %v2601 = vsel %vm1563, %v2585, %v2333
        %v2603 = vsel %vm1580, %v2587, %v2347
        %v2605 = vsel %vm1580, %v2589, %v2349
        %v2607 = vsel %vm1580, %v2591, %v2351
        %v2609 = vsel %vm1580, %v2593, %v2353
        %v2611 = vsel %vm1580, %v2595, %v2355
        %v2613 = vsel %vm1580, %v2597, %v2357
        %v2615 = vsel %vm1580, %v2599, %v2359
        %v2617 = vsel %vm1580, %v2601, %v2361
        %v2619 = vsel %vm1597, %v2603, %v2375
        %v2621 = vsel %vm1597, %v2605, %v2377
        %v2623 = vsel %vm1597, %v2607, %v2379
        %v2625 = vsel %vm1597, %v2609, %v2381
        %v2627 = vsel %vm1597, %v2611, %v2383
        %v2629 = vsel %vm1597, %v2613, %v2385
        %v2631 = vsel %vm1597, %v2615, %v2387
        %v2633 = vsel %vm1597, %v2617, %v2389
        %v2635 = vsel %vm1614, %v2619, %v2395
        %v2637 = vsel %vm1614, %v2621, %v2397
        %v2639 = vsel %vm1614, %v2623, %v2399
        %v2641 = vsel %vm1614, %v2625, %v2401
        %v2643 = vsel %vm1614, %v2627, %v2403
        %v2645 = vsel %vm1614, %v2629, %v2405
        %v2647 = vsel %vm1614, %v2631, %v2407
        %v2649 = vsel %vm1614, %v2633, %v2409
        %v2651 = vsel %vm1631, %v2635, %v2415
        %v2653 = vsel %vm1631, %v2637, %v2417
        %v2655 = vsel %vm1631, %v2639, %v2419
        %v2657 = vsel %vm1631, %v2641, %v2421
        %v2659 = vsel %vm1631, %v2643, %v2423
        %v2661 = vsel %vm1631, %v2645, %v2425
        %v2663 = vsel %vm1631, %v2647, %v2427
        %v2665 = vsel %vm1631, %v2649, %v2429
        %v2667 = vsel %vm1648, %v2651, %v2431
        %v2669 = vsel %vm1648, %v2653, %v2433
        %v2671 = vsel %vm1648, %v2655, %v2435
        %v2673 = vsel %vm1648, %v2657, %v2437
        %v2675 = vsel %vm1648, %v2659, %v2439
        %v2677 = vsel %vm1648, %v2661, %v2441
        %v2679 = vsel %vm1648, %v2663, %v2443
        %v2681 = vsel %vm1648, %v2665, %v2445
        %v2683 = vsel %vm1665, %v2667, %v2447
        %v2685 = vsel %vm1665, %v2669, %v2449
        %v2687 = vsel %vm1665, %v2671, %v2451
        %v2689 = vsel %vm1665, %v2673, %v2453
        %v2691 = vsel %vm1665, %v2675, %v2455
        %v2693 = vsel %vm1665, %v2677, %v2457
        %v2695 = vsel %vm1665, %v2679, %v2459
        %v2697 = vsel %vm1665, %v2681, %v2461
        %v2699 = vsel %vm1682, %v2683, %v2463
        %v2701 = vsel %vm1682, %v2685, %v2465
        %v2703 = vsel %vm1682, %v2687, %v2467
        %v2705 = vsel %vm1682, %v2689, %v2469
        %v2707 = vsel %vm1682, %v2691, %v2471
        %v2709 = vsel %vm1682, %v2693, %v2473
        %v2711 = vsel %vm1682, %v2695, %v2475
        %v2713 = vsel %vm1682, %v2697, %v2477
        %v2715 = vsel %vm1699, %v2699, %v2479
        %v2717 = vsel %vm1699, %v2701, %v2481
        %v2719 = vsel %vm1699, %v2703, %v2483
        %v2721 = vsel %vm1699, %v2705, %v2485
        %v2723 = vsel %vm1699, %v2707, %v2487
        %v2725 = vsel %vm1699, %v2709, %v2489
        %v2727 = vsel %vm1699, %v2711, %v2491
        %v2729 = vsel %vm1699, %v2713, %v2493
        %2730 = vrot.lane.b32.xlu0 %v886, 4
        %v2731 = vpop.permute.xlu0 %2730
        %2732 = vrot.lane.b32.xlu0 %v887, 4
        %v2733 = vpop.permute.xlu0 %2732
        %2734 = vrot.lane.b32.xlu0 %v888, 4
        %v2735 = vpop.permute.xlu0 %2734
        %2736 = vrot.lane.b32.xlu0 %v889, 4
        %v2737 = vpop.permute.xlu0 %2736
        %2738 = vrot.lane.b32.xlu0 %v890, 4
        %v2739 = vpop.permute.xlu0 %2738
        %2740 = vrot.lane.b32.xlu0 %v891, 4
        %v2741 = vpop.permute.xlu0 %2740
        %2742 = vrot.lane.b32.xlu0 %v876, 4
        %v2743 = vpop.permute.xlu0 %2742
        %2744 = vrot.lane.b32.xlu0 %v892, 4
        %v2745 = vpop.permute.xlu0 %2744
        %2746 = vrot.lane.b32.xlu0 %v588, 4
        %v2747 = vpop.permute.xlu0 %2746
        %v2749 = vsel %vm1461, %v598, %v2731
        %v2751 = vsel %vm1461, %v599, %v2733
        %v2753 = vsel %vm1461, %v600, %v2735
        %v2755 = vsel %vm1461, %v601, %v2737
        %v2757 = vsel %vm1461, %v602, %v2739
        %v2759 = vsel %vm1461, %v603, %v2741
        %v2761 = vsel %vm1461, %v587, %v2743
        %v2763 = vsel %vm1461, %v604, %v2745
        %v2765 = vsel %vm1461, %v588, %v2747
        %v2782 = vrot.slane %v2495, 1
        %v2783 = vrot.slane %v2749, 1
        %v2784 = vsel %vm1156, %v2782, %v2783
        %v2785 = vrot.slane %v2497, 1
        %v2786 = vrot.slane %v2751, 1
        %v2787 = vsel %vm1156, %v2785, %v2786
        %v2788 = vrot.slane %v2499, 1
        %v2789 = vrot.slane %v2753, 1
        %v2790 = vsel %vm1156, %v2788, %v2789
        %v2791 = vrot.slane %v2501, 1
        %v2792 = vrot.slane %v2755, 1
        %v2793 = vsel %vm1156, %v2791, %v2792
        %v2794 = vrot.slane %v2503, 1
        %v2795 = vrot.slane %v2757, 1
        %v2796 = vsel %vm1156, %v2794, %v2795
        %v2797 = vrot.slane %v2505, 1
        %v2798 = vrot.slane %v2759, 1
        %v2799 = vsel %vm1156, %v2797, %v2798
        %v2800 = vrot.slane %v2761, 1
        %v2801 = vrot.slane %v2763, 1
        %v2802 = vsel %vm1156, %v2800, %v2801
        %v2803 = vrot.slane %v1463, 1
        %v2804 = vrot.slane %v2765, 1
        %v2805 = vsel %vm1156, %v2803, %v2804
        %2806 = vrot.lane.b32.xlu0 %v2784, 64
        %v2807 = vpop.permute.xlu0 %2806
        %2808 = vrot.lane.b32.xlu0 %v2787, 64
        %v2809 = vpop.permute.xlu0 %2808
        %2810 = vrot.lane.b32.xlu0 %v2790, 64
        %v2811 = vpop.permute.xlu0 %2810
        %2812 = vrot.lane.b32.xlu0 %v2793, 64
        %v2813 = vpop.permute.xlu0 %2812
        %2814 = vrot.lane.b32.xlu0 %v2796, 64
        %v2815 = vpop.permute.xlu0 %2814
        %2816 = vrot.lane.b32.xlu0 %v2799, 64
        %v2817 = vpop.permute.xlu0 %2816
        %2818 = vrot.lane.b32.xlu0 %v2802, 64
        %v2819 = vpop.permute.xlu0 %2818
        %2820 = vrot.lane.b32.xlu0 %v2805, 64
        %v2821 = vpop.permute.xlu0 %2820
        %v2823 = vsel %vm1813, %v2715, %v2807
        %v2825 = vsel %vm1813, %v2717, %v2809
        %v2827 = vsel %vm1813, %v2719, %v2811
        %v2829 = vsel %vm1813, %v2721, %v2813
        %v2831 = vsel %vm1813, %v2723, %v2815
        %v2833 = vsel %vm1813, %v2725, %v2817
        %v2835 = vsel %vm1813, %v2727, %v2819
        %v2837 = vsel %vm1813, %v2729, %v2821
        %v2838 = vsel %vm1857, %v2823, 0
        %v2840 = vsel %vm1857, %v2825, 0
        %v2842 = vsel %vm1857, %v2827, 0
        %v2844 = vsel %vm1857, %v2829, 0
        %v2846 = vsel %vm1857, %v2831, 0
        %v2848 = vsel %vm1857, %v2833, 0
        %v2850 = vsel %vm1857, %v2835, 0
        %v2852 = vsel %vm1857, %v2837, 0
        %2854 = vmatpush.bf16.msra.mxu0 0
        %2855 = vmatpush.bf16.msra.mxu0 0
        %2856 = vmatpush.bf16.msra.mxu0 0
        %2857 = vmatpush.bf16.msra.mxu0 %v1876
        %2858 = vmatpush.bf16.msra.mxu0 %v1851
        %2859 = vmatpush.bf16.msra.mxu0 %v1850
        %2860 = vmatpush.bf16.msra.mxu0 %v1849
        %2861 = vmatpush.bf16.msra.mxu0 %v1848
        %2862 = vmatmul.bf16.gmra.mxu0 %v2838
        %v2863 = vpop.f32.mrf.mxu0
        %v2864 = vadd.f32 0.0, %v2863
        %v2865 = vpop.f32.mrf.mxu0
        %v2866 = vadd.f32 0.0, %v2865
        %2867 = vmatmul.bf16.gmra.mxu0 %v2840
        %v2868 = vpop.f32.mrf.mxu0
        %v2869 = vadd.f32 0.0, %v2868
        %v2870 = vpop.f32.mrf.mxu0
        %v2871 = vadd.f32 0.0, %v2870
        %2872 = vmatmul.bf16.gmra.mxu0 %v2842
        %v2873 = vpop.f32.mrf.mxu0
        %v2874 = vadd.f32 0.0, %v2873
        %v2875 = vpop.f32.mrf.mxu0
        %v2876 = vadd.f32 0.0, %v2875
        %2877 = vmatmul.bf16.gmra.mxu0 %v2844
        %v2878 = vpop.f32.mrf.mxu0
        %v2879 = vadd.f32 0.0, %v2878
        %v2880 = vpop.f32.mrf.mxu0
        %v2881 = vadd.f32 0.0, %v2880
        %2882 = vmatmul.bf16.gmra.mxu0 %v2846
        %v2883 = vpop.f32.mrf.mxu0
        %v2884 = vadd.f32 0.0, %v2883
        %v2885 = vpop.f32.mrf.mxu0
        %v2886 = vadd.f32 0.0, %v2885
        %2887 = vmatmul.bf16.gmra.mxu0 %v2848
        %v2888 = vpop.f32.mrf.mxu0
        %v2889 = vadd.f32 0.0, %v2888
        %v2890 = vpop.f32.mrf.mxu0
        %v2891 = vadd.f32 0.0, %v2890
        %2892 = vmatmul.bf16.gmra.mxu0 %v2850
        %v2893 = vpop.f32.mrf.mxu0
        %v2894 = vadd.f32 0.0, %v2893
        %v2895 = vpop.f32.mrf.mxu0
        %v2896 = vadd.f32 0.0, %v2895
        %2897 = vmatmul.bf16.gmra.mxu0 %v2852
        %v2898 = vpop.f32.mrf.mxu0
        %v2899 = vadd.f32 0.0, %v2898
        %v2900 = vpop.f32.mrf.mxu0
        %v2901 = vadd.f32 0.0, %v2900
        %2902 = vdwg.mxu0
        %v2903 = vmul.f32 %v2864, %v1928
        %v2904 = vmul.f32 %v2866, %v1928
        %v2905 = vmul.f32 %v2869, %v1928
        %v2906 = vmul.f32 %v2871, %v1928
        %v2907 = vmul.f32 %v2874, %v1928
        %v2908 = vmul.f32 %v2876, %v1928
        %v2909 = vmul.f32 %v2879, %v1928
        %v2910 = vmul.f32 %v2881, %v1928
        %v2911 = vmul.f32 %v2884, %v1928
        %v2912 = vmul.f32 %v2886, %v1928
        %v2913 = vmul.f32 %v2889, %v1928
        %v2914 = vmul.f32 %v2891, %v1928
        %v2915 = vmul.f32 %v2894, %v1928
        %v2916 = vmul.f32 %v2896, %v1928
        %v2917 = vmul.f32 %v2899, %v1928
        %v2918 = vmul.f32 %v2901, %v1928
        %v2919 = vadd.f32 %v2903, %v1947
        %v2920 = vadd.f32 %v2904, %v1947
        %v2921 = vadd.f32 %v2905, %v1947
        %v2922 = vadd.f32 %v2906, %v1947
        %v2923 = vadd.f32 %v2907, %v1947
        %v2924 = vadd.f32 %v2908, %v1947
        %v2925 = vadd.f32 %v2909, %v1947
        %v2926 = vadd.f32 %v2910, %v1947
        %v2927 = vadd.f32 %v2911, %v1947
        %v2928 = vadd.f32 %v2912, %v1947
        %v2929 = vadd.f32 %v2913, %v1947
        %v2930 = vadd.f32 %v2914, %v1947
        %v2931 = vadd.f32 %v2915, %v1947
        %v2932 = vadd.f32 %v2916, %v1947
        %v2933 = vadd.f32 %v2917, %v1947
        %v2934 = vadd.f32 %v2918, %v1947
        %v2935 = vmax.f32 %v2919, 0.0
        %v2936 = vmax.f32 %v2920, 0.0
        %v2937 = vmax.f32 %v2921, 0.0
        %v2938 = vmax.f32 %v2922, 0.0
        %v2939 = vmax.f32 %v2923, 0.0
        %v2940 = vmax.f32 %v2924, 0.0
        %v2941 = vmax.f32 %v2925, 0.0
        %v2942 = vmax.f32 %v2926, 0.0
        %v2943 = vmax.f32 %v2927, 0.0
        %v2944 = vmax.f32 %v2928, 0.0
        %v2945 = vmax.f32 %v2929, 0.0
        %v2946 = vmax.f32 %v2930, 0.0
        %v2947 = vmax.f32 %v2931, 0.0
        %v2948 = vmax.f32 %v2932, 0.0
        %v2949 = vmax.f32 %v2933, 0.0
        %v2950 = vmax.f32 %v2934, 0.0
        %v2951 = vpack.c.bf16 %v2935, %v2935
        %v2952 = vpack.c.bf16 %v2936, %v2936
        %v2953 = vpack.c.bf16 %v2937, %v2937
        %v2954 = vpack.c.bf16 %v2938, %v2938
        %v2955 = vpack.c.bf16 %v2939, %v2939
        %v2956 = vpack.c.bf16 %v2940, %v2940
        %v2957 = vpack.c.bf16 %v2941, %v2941
        %v2958 = vpack.c.bf16 %v2942, %v2942
        %v2959 = vpack.c.bf16 %v2943, %v2943
        %v2960 = vpack.c.bf16 %v2944, %v2944
        %v2961 = vpack.c.bf16 %v2945, %v2945
        %v2962 = vpack.c.bf16 %v2946, %v2946
        %v2963 = vpack.c.bf16 %v2947, %v2947
        %v2964 = vpack.c.bf16 %v2948, %v2948
        %v2965 = vpack.c.bf16 %v2949, %v2949
        %v2966 = vpack.c.bf16 %v2950, %v2950
        %s2967 = scalar_lea.vmem %s281, 64 [#allocation2]
        %2968 = vst [vmem:[%s2967] sm:$0xf] %v2951
        %2969 = vst [vmem:[%s2967 + $0x4] sm:$0xf] %v2952
        %2970 = vst [vmem:[%s2967 + $0x8] sm:$0xf] %v2953
        %2971 = vst [vmem:[%s2967 + $0xc] sm:$0xf] %v2954
        %2972 = vst [vmem:[%s2967 + $0x10] sm:$0xf] %v2955
        %2973 = vst [vmem:[%s2967 + $0x14] sm:$0xf] %v2956
        %2974 = vst [vmem:[%s2967 + $0x18] sm:$0xf] %v2957
        %2975 = vst [vmem:[%s2967 + $0x1c] sm:$0xf] %v2958
        %2976 = vst [vmem:[%s2967 + $0x20] sm:$0xf] %v2959
        %2977 = vst [vmem:[%s2967 + $0x24] sm:$0xf] %v2960
        %2978 = vst [vmem:[%s2967 + $0x28] sm:$0xf] %v2961
        %2979 = vst [vmem:[%s2967 + $0x2c] sm:$0xf] %v2962
        %2980 = vst [vmem:[%s2967 + $0x30] sm:$0xf] %v2963
        %2981 = vst [vmem:[%s2967 + $0x34] sm:$0xf] %v2964
        %2982 = vst [vmem:[%s2967 + $0x38] sm:$0xf] %v2965
        %2983 = vst [vmem:[%s2967 + $0x3c] sm:$0xf] %v2966
        %s2984 = sand.u32 %s171, 1
        %s2985 = scalar_lea.sflag [#allocation3], %s2984
        %s2986 = sand.u32 %s171, 1
        %s2987 = smul.addr %s2986, 128
        %s2988 = scalar_lea.vmem [#allocation2], %s2987
        // Predicated region
        $region41: #{tpu_custom_call.1} parent=39 // pred_check
          %p2989 = pneg %p181
        $region42: #{tpu_custom_call.1} parent=39 // pred_check_branch
          %2991 = sbr.rel (%p2989) target = $region44
        $region43: #{tpu_custom_call.1} parent=39 // pred_region
          %2993 = vsyncadd %s2985, 0
          %s2994 = smul.addr %s23, 32
          %s2995 = sadd.s32 %s24, %s2994
          %s2996 = smul.addr %s2995, 4
          %s2997 = scalar_lea.hbm %s5, %s2996
          %s2998 = sshll.u32 %s2988, 4
          %s2999 = int_to_ptr.vmem [resolvable:$true] %s2998
          %s3000 = sshll.u32 %s2997, 4
          %s3001 = int_to_ptr.hbm [resolvable:$true] %s3000
          %3006 = dma.vmem_to_hbm [thread:$0]  %s2999, 2048, %s3001, %s2985, 64, 64, 4
        $region44: #{tpu_custom_call.1} parent=39 // pred_fallthru
          _
      $region40: #{tpu_custom_call.1} parent=5 // pred_fallthru
        _
      %p3007 = scmp.le.s32.totalorder 2, %s14
      // Predicated region
      $region45: #{tpu_custom_call.1} parent=5 // pred_check
        %p3008 = pneg %p3007
      $region46: #{tpu_custom_call.1} parent=5 // pred_check_branch
        %3010 = sbr.rel (%p3008) target = $region48
      $region47: #{tpu_custom_call.1} parent=5 // pred_region
        %s3011 = ssub.s32 %s14, 2
        // Predicated region
        $region49: #{tpu_custom_call.1} parent=47 // pred_check
          %p3012 = pneg %p187
        $region50: #{tpu_custom_call.1} parent=47 // pred_check_branch
          %3014 = sbr.rel (%p3012) target = $region52
        $region51: #{tpu_custom_call.1} parent=47 // pred_region
          %s3015 = sand.u32 %s172, 1
          %s3016 = scalar_lea.sflag [#allocation3], %s3015
          %s3017 = sand.u32 %s172, 1
          %s3018 = smul.addr %s3017, 128
          %s3019 = scalar_lea.vmem [#allocation2], %s3018
          %3021 = dma.done %s3016, 2048
        $region52: #{tpu_custom_call.1} parent=47 // pred_fallthru
          _
      $region48: #{tpu_custom_call.1} parent=5 // pred_fallthru
        _
    $region6: #{tpu_custom_call.1} parent=1 // loop_footer
      %s18 = sadd.s32 1, %s14
    $region7: #{tpu_custom_call.1} parent=1 // loop_footer_branch
      %13 = sbr.rel target = $region3
    $region8: #{tpu_custom_call.1} parent=1 // loop_exit
      _
    %3022 = vsyncpa [#allocation3], 1
    %s3023 = scalar_lea.sflag [#allocation3], 1
    %3024 = vsyncpa %s3023, 1

</llo_original>
